<compile_context>
chip_gen: v6e
topology: v6e:2x2x1
jax: 0.10.0
libtpu: 0.0.40
codegen_flags: <defaults>
</compile_context>

<pallas_src>
import math

import jax
import jax.numpy as jnp
from jax.experimental import pallas as pl
from jax.experimental.pallas import tpu as pltpu

# ----------------------------- config (small, synthetic) ---------------------
VOCAB = 100
B, S, H = 2, 8, 32          # batch, seq, hidden ("hsize")
NH, HD = 4, 8               # heads, head dim (NH * HD == H)
FFN = 64                    # intermediate size
PAD_TOKEN = 0               # self.pad_token = 0 in the module

# rows of the packed small-parameter tile (one (8,128) f32 VMEM tile, one DMA)
PV_BO, PV_LN1G, PV_LN1B, PV_B1, PV_B2, PV_LN2G, PV_LN2B = range(7)


# ----------------------------- kernel helpers ---------------------------------
def _layer_norm(x, gamma, beta, eps=1e-12):
    mu = jnp.mean(x, axis=-1, keepdims=True)
    var = jnp.mean((x - mu) * (x - mu), axis=-1, keepdims=True)
    inv = jax.lax.rsqrt(var + eps)
    return (x - mu) * inv * gamma + beta


def _gelu(x):
    # tanh approximation of GELU (EUP-friendly).
    # TODO(synk): HF/SpanBERT default is exact erf GELU; ~1e-3 deviation here.
    c = math.sqrt(2.0 / math.pi)
    return 0.5 * x * (1.0 + jnp.tanh(c * (x + 0.044715 * x * x * x)))


# ----------------------------- Pallas kernel ----------------------------------
def bert_layer_kernel(x_ref, mask_ref, wqkv_ref, wo_ref, w1_ref, w2_ref,
                      pvec_ref, out_ref):
    x = x_ref[...]                               # (S, H) f32, one batch element
    pv = pvec_ref[...]                           # (8, 128) f32: packed vectors
    bo = pv[PV_BO:PV_BO + 1, :H]
    ln1g = pv[PV_LN1G:PV_LN1G + 1, :H]
    ln1b = pv[PV_LN1B:PV_LN1B + 1, :H]
    b1 = pv[PV_B1:PV_B1 + 1, :FFN]
    b2 = pv[PV_B2:PV_B2 + 1, :H]
    ln2g = pv[PV_LN2G:PV_LN2G + 1, :H]
    ln2b = pv[PV_LN2B:PV_LN2B + 1, :H]

    # additive key bias: 0 for real tokens, -1e9 for padding
    neg_bias = (1.0 - mask_ref[...]) * (-1e9)    # (1, S)

    # --- fused QKV projection: one (S,H)x(H,3H) bf16 MXU pass, f32 accum -----
    # 1/sqrt(HD) is already folded into the frozen Q weight columns.
    # QKV bias dropped: provably zero for this frozen init.
    # TODO(synk): if real frozen BERT weights are loaded, add the QKV bias back
    # (packed tile) with the Q bias also scaled by 1/sqrt(HD).
    qkv = jnp.dot(x.astype(jnp.bfloat16), wqkv_ref[...],
                  preferred_element_type=jnp.float32)            # (S, 3H) f32

    # --- multi-head self-attention, all heads batched on a leading axis ------
    # Head blocks are lane-contiguous in qkv; stacking them on a leading batch
    # axis keeps the batched dots in the single-batch-dim 'bqd,bkd->bqk' form.
    def split_heads(base):
        return jnp.stack(
            [qkv[:, base + h * HD: base + (h + 1) * HD] for h in range(NH)],
            axis=0)                                              # (NH, S, HD)

    q = split_heads(0).astype(jnp.bfloat16)
    k = split_heads(H).astype(jnp.bfloat16)
    v = split_heads(2 * H).astype(jnp.bfloat16)

    s = jnp.einsum('hqd,hkd->hqk', q, k,
                   preferred_element_type=jnp.float32)           # (NH, S, S) f32
    s = s + neg_bias                                             # (1,S) broadcast
    m = jnp.max(s, axis=-1, keepdims=True)
    p = jnp.exp(s - m)                                           # one softmax pass
    p = p * pl.reciprocal(jnp.sum(p, axis=-1, keepdims=True), approx=True)

    ctx = jnp.einsum('hqk,hkd->hqd', p.astype(jnp.bfloat16), v,
                     preferred_element_type=jnp.float32)         # (NH, S, HD)
    # re-join heads lane-contiguously -> one (S,H)x(H,H) output projection
    ctx = jnp.concatenate([ctx[h] for h in range(NH)], axis=-1)  # (S, H)
    attn = jnp.dot(ctx.astype(jnp.bfloat16), wo_ref[...],
                   preferred_element_type=jnp.float32) + bo

    h1 = _layer_norm(x + attn, ln1g, ln1b)

    # --- feed-forward (bf16 MXU feeds, f32 elementwise) -----------------------
    ff = jnp.dot(h1.astype(jnp.bfloat16), w1_ref[...],
                 preferred_element_type=jnp.float32) + b1
    ff = _gelu(ff)
    ff = jnp.dot(ff.astype(jnp.bfloat16), w2_ref[...],
                 preferred_element_type=jnp.float32) + b2
    out_ref[...] = _layer_norm(h1 + ff, ln2g, ln2b)


def bert_layer(x, attn_mask, params):
    """x: (B, S, H) f32; attn_mask: (B, S) in {0,1}.  Returns (B, S, H) f32."""
    wqkv, wo, w1, w2, pvec = params

    x = x.astype(jnp.float32)                           # (B, S, H)
    mask3d = attn_mask.reshape(B, 1, S).astype(jnp.float32)

    const2 = lambda b: (0, 0)
    in_specs = [
        pl.BlockSpec((None, S, H), lambda b: (b, 0, 0)),   # hidden states
        pl.BlockSpec((None, 1, S), lambda b: (b, 0, 0)),   # attention mask
        pl.BlockSpec((H, 3 * H), const2),                  # fused QKV weight (bf16)
        pl.BlockSpec((H, H), const2),                      # Wo (bf16)
        pl.BlockSpec((H, FFN), const2),                    # W1 (bf16)
        pl.BlockSpec((FFN, H), const2),                    # W2 (bf16)
        pl.BlockSpec((8, 128), const2),                    # packed small params
    ]

    # rough op counts so XLA schedules around the custom call sensibly
    flops = (2 * B * S * H * 3 * H            # QKV projection
             + 4 * B * NH * S * S * HD        # scores + context
             + 2 * B * S * H * H              # output projection
             + 4 * B * S * H * FFN)           # FFN up + down
    transcendentals = B * NH * S * S + B * S * FFN
    bytes_accessed = (2 * B * S * H * 4 + B * S * 4
                      + (H * 3 * H + H * H + 2 * H * FFN) * 2 + 8 * 128 * 4)

    out = pl.pallas_call(
        bert_layer_kernel,
        out_shape=jax.ShapeDtypeStruct((B, S, H), jnp.float32),
        grid=(B,),                                       # shards across v7x's 2 TCs
        in_specs=in_specs,
        out_specs=pl.BlockSpec((None, S, H), lambda b: (b, 0, 0)),
        compiler_params=pltpu.CompilerParams(
            dimension_semantics=("parallel",)),
        cost_estimate=pl.CostEstimate(flops=flops,
                                      transcendentals=transcendentals,
                                      bytes_accessed=bytes_accessed),
    )(x, mask3d, wqkv, wo, w1, w2, pvec)
    return out


# ----------------------------- parameter init (deterministic) -----------------
def init_params(key):
    ks = jax.random.split(key, 8)
    s = 0.02
    word_emb = s * jax.random.normal(ks[0], (VOCAB, H), jnp.float32)
    pos_emb = s * jax.random.normal(ks[1], (S, H), jnp.float32)

    wq = s * jax.random.normal(ks[2], (H, H), jnp.float32)
    wk = s * jax.random.normal(ks[3], (H, H), jnp.float32)
    wv = s * jax.random.normal(ks[4], (H, H), jnp.float32)
    wo = s * jax.random.normal(ks[5], (H, H), jnp.float32)
    w1 = s * jax.random.normal(ks[6], (H, FFN), jnp.float32)
    w2 = s * jax.random.normal(ks[7], (FFN, H), jnp.float32)

    # fused QKV weight with the attention scale constant-folded into the Q
    # block; weights are frozen -> true init-time fold, not a runtime op.
    scale = 1.0 / math.sqrt(HD)
    wqkv = jnp.concatenate([wq * scale, wk, wv], axis=1)           # (H, 3H)

    # MXU feeds in bf16 (f32 accumulation in-kernel); halves weight footprint.
    wqkv = wqkv.astype(jnp.bfloat16)
    wo = wo.astype(jnp.bfloat16)
    w1 = w1.astype(jnp.bfloat16)
    w2 = w2.astype(jnp.bfloat16)

    # small per-layer vectors packed into a single (8,128) f32 tile (1 DMA).
    # TODO(synk): at real BERT sizes (H=768 / FFN=3072 > 128 lanes) pack as
    # (n_vec, max_dim) or keep LN params with the activations instead.
    bo = jnp.zeros((H,), jnp.float32)
    ln1g = jnp.ones((H,), jnp.float32)
    ln1b = jnp.zeros((H,), jnp.float32)
    b1 = jnp.zeros((FFN,), jnp.float32)
    b2 = jnp.zeros((H,), jnp.float32)
    ln2g = jnp.ones((H,), jnp.float32)
    ln2b = jnp.zeros((H,), jnp.float32)
    pvec = jnp.zeros((8, 128), jnp.float32)
    for row, vec in zip((PV_BO, PV_LN1G, PV_LN1B, PV_B1, PV_B2, PV_LN2G, PV_LN2B),
                        (bo, ln1g, ln1b, b1, b2, ln2g, ln2b)):
        pvec = pvec.at[row, :vec.shape[0]].set(vec)

    layer = (wqkv, wo, w1, w2, pvec)
    return word_emb, pos_emb, layer


# ----------------------------- BaseDocEncoder wrapper -------------------------
class BaseDocEncoderPallas:
    """Frozen BERT-style document encoder; hsize == H.

    The original forward(example) is a stub; subclasses encode documents via
    self.bert(input_ids, attention_mask) -> last_hidden_state.  encode() below
    reproduces that path with the Pallas kernel as the hot path.
    """

    def __init__(self, key, max_training_segments=4):
        self.max_training_segments = max_training_segments
        self.pad_token = PAD_TOKEN
        self.hsize = H
        self.word_emb, self.pos_emb, self.layer_params = init_params(key)

    def encode(self, input_ids):
        # glue: embedding gather + position embeddings (plain JAX)
        # TODO(synk): real BertModel also adds token_type embeddings, an
        # embedding LayerNorm, and stacks many layers; single-layer stub here.
        x = self.word_emb[input_ids] + self.pos_emb[None, :, :]        # (B, S, H)
        attn_mask = (input_ids != self.pad_token).astype(jnp.float32)  # (B, S)
        return bert_layer(x.astype(jnp.float32), attn_mask, self.layer_params)

    def forward(self, example):
        # the PyTorch base class forward() returns None
        return None


# ----------------------------- main --------------------------------------------
if __name__ == "__main__":
    key = jax.random.PRNGKey(0)
    pkey, dkey = jax.random.split(key)
    enc = BaseDocEncoderPallas(pkey)

    # deterministic example input: token ids with trailing padding (pad_token=0)
    ids = jax.random.randint(dkey, (B, S), 1, VOCAB, dtype=jnp.int32)
    ids = ids.at[:, -2:].set(PAD_TOKEN)   # pad last two positions

    out = enc.encode(ids)
    jax.block_until_ready(out)
    assert out.shape == (B, S, H) and out.dtype == jnp.float32
    assert bool(jnp.all(jnp.isfinite(out)))

    # TODO(synk): forward(example) in the reference module is a stub (returns
    # None); the encoder path above is what subclasses run through self.bert.
    print("KERNEL_OK")
</pallas_src>

<mosaic_0001>
module attributes {stable_mosaic.version = 11 : i64} {
  func.func @bert_layer_kernel(%arg0: i32, %arg1: memref<1x8x32xf32, #tpu.memory_space<vmem>>, %arg2: memref<1x1x8xf32, #tpu.memory_space<vmem>>, %arg3: memref<32x96xbf16, #tpu.memory_space<vmem>>, %arg4: memref<32x32xbf16, #tpu.memory_space<vmem>>, %arg5: memref<32x64xbf16, #tpu.memory_space<vmem>>, %arg6: memref<64x32xbf16, #tpu.memory_space<vmem>>, %arg7: memref<8x128xf32, #tpu.memory_space<vmem>>, %arg8: memref<1x8x32xf32, #tpu.memory_space<vmem>>) attributes {dimension_semantics = [#tpu.dimension_semantics<parallel>], iteration_bounds = array<i64: 2>, scalar_prefetch = 0 : i64, scratch_operands = 0 : i64, tpu.core_type = #tpu.core_type<tc>, window_params = [{transform_indices = @transform_0, window_bounds = array<i64: 1, 8, 32>}, {transform_indices = @transform_1, window_bounds = array<i64: 1, 1, 8>}, {pipeline_mode = #tpu.pipeline_mode<synchronous>, transform_indices = @transform_2, window_bounds = array<i64: 32, 96>}, {pipeline_mode = #tpu.pipeline_mode<synchronous>, transform_indices = @transform_3, window_bounds = array<i64: 32, 32>}, {pipeline_mode = #tpu.pipeline_mode<synchronous>, transform_indices = @transform_4, window_bounds = array<i64: 32, 64>}, {pipeline_mode = #tpu.pipeline_mode<synchronous>, transform_indices = @transform_5, window_bounds = array<i64: 64, 32>}, {pipeline_mode = #tpu.pipeline_mode<synchronous>, transform_indices = @transform_6, window_bounds = array<i64: 8, 128>}, {transform_indices = @transform_7, window_bounds = array<i64: 1, 8, 32>}]} {
    %c0 = arith.constant 0 : index
    %c0_0 = arith.constant 0 : index
    %c0_1 = arith.constant 0 : index
    %0 = vector.load %arg1[%c0, %c0_0, %c0_1] : memref<1x8x32xf32, #tpu.memory_space<vmem>>, vector<1x8x32xf32>
    %1 = vector.shape_cast %0 : vector<1x8x32xf32> to vector<8x32xf32>
    %c0_2 = arith.constant 0 : index
    %c0_3 = arith.constant 0 : index
    %2 = vector.load %arg7[%c0_2, %c0_3] : memref<8x128xf32, #tpu.memory_space<vmem>>, vector<8x128xf32>
    %3 = vector.extract_strided_slice %2 {offsets = [0, 0], sizes = [1, 32], strides = [1, 1]} : vector<8x128xf32> to vector<1x32xf32>
    %4 = vector.extract_strided_slice %2 {offsets = [1, 0], sizes = [1, 32], strides = [1, 1]} : vector<8x128xf32> to vector<1x32xf32>
    %5 = vector.extract_strided_slice %2 {offsets = [2, 0], sizes = [1, 32], strides = [1, 1]} : vector<8x128xf32> to vector<1x32xf32>
    %6 = vector.extract_strided_slice %2 {offsets = [3, 0], sizes = [1, 64], strides = [1, 1]} : vector<8x128xf32> to vector<1x64xf32>
    %7 = vector.extract_strided_slice %2 {offsets = [4, 0], sizes = [1, 32], strides = [1, 1]} : vector<8x128xf32> to vector<1x32xf32>
    %8 = vector.extract_strided_slice %2 {offsets = [5, 0], sizes = [1, 32], strides = [1, 1]} : vector<8x128xf32> to vector<1x32xf32>
    %9 = vector.extract_strided_slice %2 {offsets = [6, 0], sizes = [1, 32], strides = [1, 1]} : vector<8x128xf32> to vector<1x32xf32>
    %c0_4 = arith.constant 0 : index
    %c0_5 = arith.constant 0 : index
    %c0_6 = arith.constant 0 : index
    %10 = vector.load %arg2[%c0_4, %c0_5, %c0_6] : memref<1x1x8xf32, #tpu.memory_space<vmem>>, vector<1x1x8xf32>
    %11 = vector.shape_cast %10 : vector<1x1x8xf32> to vector<1x8xf32>
    %cst = arith.constant 1.000000e+00 : f32
    %12 = vector.broadcast %cst : f32 to vector<1x8xf32>
    %13 = arith.subf %12, %11 : vector<1x8xf32>
    %cst_7 = arith.constant -1.000000e+09 : f32
    %14 = vector.broadcast %cst_7 : f32 to vector<1x8xf32>
    %15 = arith.mulf %13, %14 : vector<1x8xf32>
    %16 = arith.truncf %1 : vector<8x32xf32> to vector<8x32xbf16>
    %c0_8 = arith.constant 0 : index
    %c0_9 = arith.constant 0 : index
    %17 = vector.load %arg3[%c0_8, %c0_9] : memref<32x96xbf16, #tpu.memory_space<vmem>>, vector<32x96xbf16>
    %cst_10 = arith.constant dense<0.000000e+00> : vector<8x96xf32>
    %18 = tpu.matmul %16, %17, %cst_10 {dimension_numbers = #tpu.dot_dimension_numbers<[1], [0], [0], [1], [0, 0, 1, 1], [], []>} : vector<8x32xbf16>, vector<32x96xbf16>, vector<8x96xf32> -> vector<8x96xf32>
    %19 = vector.extract_strided_slice %18 {offsets = [0, 0], sizes = [8, 8], strides = [1, 1]} : vector<8x96xf32> to vector<8x8xf32>
    %20 = vector.extract_strided_slice %18 {offsets = [0, 8], sizes = [8, 8], strides = [1, 1]} : vector<8x96xf32> to vector<8x8xf32>
    %21 = vector.extract_strided_slice %18 {offsets = [0, 16], sizes = [8, 8], strides = [1, 1]} : vector<8x96xf32> to vector<8x8xf32>
    %22 = vector.extract_strided_slice %18 {offsets = [0, 24], sizes = [8, 8], strides = [1, 1]} : vector<8x96xf32> to vector<8x8xf32>
    %23 = vector.shape_cast %19 : vector<8x8xf32> to vector<1x8x8xf32>
    %24 = vector.shape_cast %20 : vector<8x8xf32> to vector<1x8x8xf32>
    %25 = vector.shape_cast %21 : vector<8x8xf32> to vector<1x8x8xf32>
    %26 = vector.shape_cast %22 : vector<8x8xf32> to vector<1x8x8xf32>
    %27 = tpu.concatenate %23, %24, %25, %26 in 0 : vector<1x8x8xf32>, vector<1x8x8xf32>, vector<1x8x8xf32>, vector<1x8x8xf32> -> vector<4x8x8xf32>
    %28 = arith.truncf %27 : vector<4x8x8xf32> to vector<4x8x8xbf16>
    %29 = vector.extract_strided_slice %18 {offsets = [0, 32], sizes = [8, 8], strides = [1, 1]} : vector<8x96xf32> to vector<8x8xf32>
    %30 = vector.extract_strided_slice %18 {offsets = [0, 40], sizes = [8, 8], strides = [1, 1]} : vector<8x96xf32> to vector<8x8xf32>
    %31 = vector.extract_strided_slice %18 {offsets = [0, 48], sizes = [8, 8], strides = [1, 1]} : vector<8x96xf32> to vector<8x8xf32>
    %32 = vector.extract_strided_slice %18 {offsets = [0, 56], sizes = [8, 8], strides = [1, 1]} : vector<8x96xf32> to vector<8x8xf32>
    %33 = vector.shape_cast %29 : vector<8x8xf32> to vector<1x8x8xf32>
    %34 = vector.shape_cast %30 : vector<8x8xf32> to vector<1x8x8xf32>
    %35 = vector.shape_cast %31 : vector<8x8xf32> to vector<1x8x8xf32>
    %36 = vector.shape_cast %32 : vector<8x8xf32> to vector<1x8x8xf32>
    %37 = tpu.concatenate %33, %34, %35, %36 in 0 : vector<1x8x8xf32>, vector<1x8x8xf32>, vector<1x8x8xf32>, vector<1x8x8xf32> -> vector<4x8x8xf32>
    %38 = arith.truncf %37 : vector<4x8x8xf32> to vector<4x8x8xbf16>
    %39 = vector.extract_strided_slice %18 {offsets = [0, 64], sizes = [8, 8], strides = [1, 1]} : vector<8x96xf32> to vector<8x8xf32>
    %40 = vector.extract_strided_slice %18 {offsets = [0, 72], sizes = [8, 8], strides = [1, 1]} : vector<8x96xf32> to vector<8x8xf32>
    %41 = vector.extract_strided_slice %18 {offsets = [0, 80], sizes = [8, 8], strides = [1, 1]} : vector<8x96xf32> to vector<8x8xf32>
    %42 = vector.extract_strided_slice %18 {offsets = [0, 88], sizes = [8, 8], strides = [1, 1]} : vector<8x96xf32> to vector<8x8xf32>
    %43 = vector.shape_cast %39 : vector<8x8xf32> to vector<1x8x8xf32>
    %44 = vector.shape_cast %40 : vector<8x8xf32> to vector<1x8x8xf32>
    %45 = vector.shape_cast %41 : vector<8x8xf32> to vector<1x8x8xf32>
    %46 = vector.shape_cast %42 : vector<8x8xf32> to vector<1x8x8xf32>
    %47 = tpu.concatenate %43, %44, %45, %46 in 0 : vector<1x8x8xf32>, vector<1x8x8xf32>, vector<1x8x8xf32>, vector<1x8x8xf32> -> vector<4x8x8xf32>
    %48 = arith.truncf %47 : vector<4x8x8xf32> to vector<4x8x8xbf16>
    "tpu.trace_start"() <{level = 10 : i32, message = "hqd,hkd->hqk"}> : () -> ()
    %cst_11 = arith.constant dense<0.000000e+00> : vector<4x8x8xf32>
    %49 = tpu.matmul %28, %38, %cst_11 {dimension_numbers = #tpu.dot_dimension_numbers<[2], [2], [1], [1], [0, 0, 0, 1, 1, 1], [0], [0]>} : vector<4x8x8xbf16>, vector<4x8x8xbf16>, vector<4x8x8xf32> -> vector<4x8x8xf32>
    "tpu.trace_stop"() : () -> ()
    %50 = vector.shape_cast %15 : vector<1x8xf32> to vector<1x1x8xf32>
    %51 = vector.broadcast %50 : vector<1x1x8xf32> to vector<4x8x8xf32>
    %52 = arith.addf %49, %51 : vector<4x8x8xf32>
    %cst_12 = arith.constant dense<0xFF800000> : vector<4x8xf32>
    %53 = vector.multi_reduction <maximumf>, %52, %cst_12 [2] : vector<4x8x8xf32> to vector<4x8xf32>
    %54 = vector.shape_cast %53 : vector<4x8xf32> to vector<4x8x1xf32>
    %55 = vector.broadcast %54 : vector<4x8x1xf32> to vector<4x8x8xf32>
    %56 = arith.subf %52, %55 : vector<4x8x8xf32>
    %57 = math.exp %56 : vector<4x8x8xf32>
    %cst_13 = arith.constant dense<0.000000e+00> : vector<4x8xf32>
    %58 = vector.multi_reduction <add>, %57, %cst_13 [2] : vector<4x8x8xf32> to vector<4x8xf32>
    %59 = vector.shape_cast %58 : vector<4x8xf32> to vector<4x8x1xf32>
    %60 = tpu.reciprocal %59 {approx = true} : vector<4x8x1xf32> -> vector<4x8x1xf32>
    %61 = vector.broadcast %60 : vector<4x8x1xf32> to vector<4x8x8xf32>
    %62 = arith.mulf %57, %61 : vector<4x8x8xf32>
    %63 = arith.truncf %62 : vector<4x8x8xf32> to vector<4x8x8xbf16>
    "tpu.trace_start"() <{level = 10 : i32, message = "hqk,hkd->hqd"}> : () -> ()
    %cst_14 = arith.constant dense<0.000000e+00> : vector<4x8x8xf32>
    %64 = tpu.matmul %63, %48, %cst_14 {dimension_numbers = #tpu.dot_dimension_numbers<[2], [1], [1], [2], [0, 0, 0, 1, 1, 2], [0], [0]>} : vector<4x8x8xbf16>, vector<4x8x8xbf16>, vector<4x8x8xf32> -> vector<4x8x8xf32>
    "tpu.trace_stop"() : () -> ()
    %65 = vector.extract_strided_slice %64 {offsets = [0, 0, 0], sizes = [1, 8, 8], strides = [1, 1, 1]} : vector<4x8x8xf32> to vector<1x8x8xf32>
    %66 = vector.shape_cast %65 : vector<1x8x8xf32> to vector<8x8xf32>
    %67 = vector.extract_strided_slice %64 {offsets = [1, 0, 0], sizes = [1, 8, 8], strides = [1, 1, 1]} : vector<4x8x8xf32> to vector<1x8x8xf32>
    %68 = vector.shape_cast %67 : vector<1x8x8xf32> to vector<8x8xf32>
    %69 = vector.extract_strided_slice %64 {offsets = [2, 0, 0], sizes = [1, 8, 8], strides = [1, 1, 1]} : vector<4x8x8xf32> to vector<1x8x8xf32>
    %70 = vector.shape_cast %69 : vector<1x8x8xf32> to vector<8x8xf32>
    %71 = vector.extract_strided_slice %64 {offsets = [3, 0, 0], sizes = [1, 8, 8], strides = [1, 1, 1]} : vector<4x8x8xf32> to vector<1x8x8xf32>
    %72 = vector.shape_cast %71 : vector<1x8x8xf32> to vector<8x8xf32>
    %73 = tpu.concatenate %66, %68, %70, %72 in 1 : vector<8x8xf32>, vector<8x8xf32>, vector<8x8xf32>, vector<8x8xf32> -> vector<8x32xf32>
    %74 = arith.truncf %73 : vector<8x32xf32> to vector<8x32xbf16>
    %c0_15 = arith.constant 0 : index
    %c0_16 = arith.constant 0 : index
    %75 = vector.load %arg4[%c0_15, %c0_16] : memref<32x32xbf16, #tpu.memory_space<vmem>>, vector<32x32xbf16>
    %cst_17 = arith.constant dense<0.000000e+00> : vector<8x32xf32>
    %76 = tpu.matmul %74, %75, %cst_17 {dimension_numbers = #tpu.dot_dimension_numbers<[1], [0], [0], [1], [0, 0, 1, 1], [], []>} : vector<8x32xbf16>, vector<32x32xbf16>, vector<8x32xf32> -> vector<8x32xf32>
    %77 = vector.broadcast %3 : vector<1x32xf32> to vector<8x32xf32>
    %78 = arith.addf %76, %77 : vector<8x32xf32>
    %79 = arith.addf %1, %78 : vector<8x32xf32>
    %cst_18 = arith.constant dense<0.000000e+00> : vector<8xf32>
    %80 = vector.multi_reduction <add>, %79, %cst_18 [1] : vector<8x32xf32> to vector<8xf32>
    %81 = vector.shape_cast %80 : vector<8xf32> to vector<8x1xf32>
    %cst_19 = arith.constant 3.200000e+01 : f32
    %82 = vector.broadcast %cst_19 : f32 to vector<8x1xf32>
    %83 = arith.divf %81, %82 : vector<8x1xf32>
    %84 = vector.broadcast %83 : vector<8x1xf32> to vector<8x32xf32>
    %85 = arith.subf %79, %84 : vector<8x32xf32>
    %86 = vector.broadcast %83 : vector<8x1xf32> to vector<8x32xf32>
    %87 = arith.subf %79, %86 : vector<8x32xf32>
    %88 = arith.mulf %85, %87 : vector<8x32xf32>
    %cst_20 = arith.constant dense<0.000000e+00> : vector<8xf32>
    %89 = vector.multi_reduction <add>, %88, %cst_20 [1] : vector<8x32xf32> to vector<8xf32>
    %90 = vector.shape_cast %89 : vector<8xf32> to vector<8x1xf32>
    %cst_21 = arith.constant 3.200000e+01 : f32
    %91 = vector.broadcast %cst_21 : f32 to vector<8x1xf32>
    %92 = arith.divf %90, %91 : vector<8x1xf32>
    %cst_22 = arith.constant 9.99999996E-13 : f32
    %93 = vector.broadcast %cst_22 : f32 to vector<8x1xf32>
    %94 = arith.addf %92, %93 : vector<8x1xf32>
    %95 = math.rsqrt %94 : vector<8x1xf32>
    %96 = vector.broadcast %83 : vector<8x1xf32> to vector<8x32xf32>
    %97 = arith.subf %79, %96 : vector<8x32xf32>
    %98 = vector.broadcast %95 : vector<8x1xf32> to vector<8x32xf32>
    %99 = arith.mulf %97, %98 : vector<8x32xf32>
    %100 = vector.broadcast %4 : vector<1x32xf32> to vector<8x32xf32>
    %101 = arith.mulf %99, %100 : vector<8x32xf32>
    %102 = vector.broadcast %5 : vector<1x32xf32> to vector<8x32xf32>
    %103 = arith.addf %101, %102 : vector<8x32xf32>
    %104 = arith.truncf %103 : vector<8x32xf32> to vector<8x32xbf16>
    %c0_23 = arith.constant 0 : index
    %c0_24 = arith.constant 0 : index
    %105 = vector.load %arg5[%c0_23, %c0_24] : memref<32x64xbf16, #tpu.memory_space<vmem>>, vector<32x64xbf16>
    %cst_25 = arith.constant dense<0.000000e+00> : vector<8x64xf32>
    %106 = tpu.matmul %104, %105, %cst_25 {dimension_numbers = #tpu.dot_dimension_numbers<[1], [0], [0], [1], [0, 0, 1, 1], [], []>} : vector<8x32xbf16>, vector<32x64xbf16>, vector<8x64xf32> -> vector<8x64xf32>
    %107 = vector.broadcast %6 : vector<1x64xf32> to vector<8x64xf32>
    %108 = arith.addf %106, %107 : vector<8x64xf32>
    %cst_26 = arith.constant 5.000000e-01 : f32
    %109 = vector.broadcast %cst_26 : f32 to vector<8x64xf32>
    %110 = arith.mulf %109, %108 : vector<8x64xf32>
    %cst_27 = arith.constant 4.471500e-02 : f32
    %111 = vector.broadcast %cst_27 : f32 to vector<8x64xf32>
    %112 = arith.mulf %111, %108 : vector<8x64xf32>
    %113 = arith.mulf %112, %108 : vector<8x64xf32>
    %114 = arith.mulf %113, %108 : vector<8x64xf32>
    %115 = arith.addf %108, %114 : vector<8x64xf32>
    %cst_28 = arith.constant 0.797884583 : f32
    %116 = vector.broadcast %cst_28 : f32 to vector<8x64xf32>
    %117 = arith.mulf %116, %115 : vector<8x64xf32>
    %118 = math.tanh %117 : vector<8x64xf32>
    %cst_29 = arith.constant 1.000000e+00 : f32
    %119 = vector.broadcast %cst_29 : f32 to vector<8x64xf32>
    %120 = arith.addf %119, %118 : vector<8x64xf32>
    %121 = arith.mulf %110, %120 : vector<8x64xf32>
    %122 = arith.truncf %121 : vector<8x64xf32> to vector<8x64xbf16>
    %c0_30 = arith.constant 0 : index
    %c0_31 = arith.constant 0 : index
    %123 = vector.load %arg6[%c0_30, %c0_31] : memref<64x32xbf16, #tpu.memory_space<vmem>>, vector<64x32xbf16>
    %cst_32 = arith.constant dense<0.000000e+00> : vector<8x32xf32>
    %124 = tpu.matmul %122, %123, %cst_32 {dimension_numbers = #tpu.dot_dimension_numbers<[1], [0], [0], [1], [0, 0, 1, 1], [], []>} : vector<8x64xbf16>, vector<64x32xbf16>, vector<8x32xf32> -> vector<8x32xf32>
    %125 = vector.broadcast %7 : vector<1x32xf32> to vector<8x32xf32>
    %126 = arith.addf %124, %125 : vector<8x32xf32>
    %127 = arith.addf %103, %126 : vector<8x32xf32>
    %cst_33 = arith.constant dense<0.000000e+00> : vector<8xf32>
    %128 = vector.multi_reduction <add>, %127, %cst_33 [1] : vector<8x32xf32> to vector<8xf32>
    %129 = vector.shape_cast %128 : vector<8xf32> to vector<8x1xf32>
    %cst_34 = arith.constant 3.200000e+01 : f32
    %130 = vector.broadcast %cst_34 : f32 to vector<8x1xf32>
    %131 = arith.divf %129, %130 : vector<8x1xf32>
    %132 = vector.broadcast %131 : vector<8x1xf32> to vector<8x32xf32>
    %133 = arith.subf %127, %132 : vector<8x32xf32>
    %134 = vector.broadcast %131 : vector<8x1xf32> to vector<8x32xf32>
    %135 = arith.subf %127, %134 : vector<8x32xf32>
    %136 = arith.mulf %133, %135 : vector<8x32xf32>
    %cst_35 = arith.constant dense<0.000000e+00> : vector<8xf32>
    %137 = vector.multi_reduction <add>, %136, %cst_35 [1] : vector<8x32xf32> to vector<8xf32>
    %138 = vector.shape_cast %137 : vector<8xf32> to vector<8x1xf32>
    %cst_36 = arith.constant 3.200000e+01 : f32
    %139 = vector.broadcast %cst_36 : f32 to vector<8x1xf32>
    %140 = arith.divf %138, %139 : vector<8x1xf32>
    %cst_37 = arith.constant 9.99999996E-13 : f32
    %141 = vector.broadcast %cst_37 : f32 to vector<8x1xf32>
    %142 = arith.addf %140, %141 : vector<8x1xf32>
    %143 = math.rsqrt %142 : vector<8x1xf32>
    %144 = vector.broadcast %131 : vector<8x1xf32> to vector<8x32xf32>
    %145 = arith.subf %127, %144 : vector<8x32xf32>
    %146 = vector.broadcast %143 : vector<8x1xf32> to vector<8x32xf32>
    %147 = arith.mulf %145, %146 : vector<8x32xf32>
    %148 = vector.broadcast %8 : vector<1x32xf32> to vector<8x32xf32>
    %149 = arith.mulf %147, %148 : vector<8x32xf32>
    %150 = vector.broadcast %9 : vector<1x32xf32> to vector<8x32xf32>
    %151 = arith.addf %149, %150 : vector<8x32xf32>
    %c0_38 = arith.constant 0 : index
    %c0_39 = arith.constant 0 : index
    %c0_40 = arith.constant 0 : index
    %152 = vector.load %arg8[%c0_38, %c0_39, %c0_40] : memref<1x8x32xf32, #tpu.memory_space<vmem>>, vector<1x8x32xf32>
    %153 = vector.shape_cast %152 : vector<1x8x32xf32> to vector<8x32xf32>
    %154 = vector.shape_cast %151 : vector<8x32xf32> to vector<1x8x32xf32>
    tpu.vector_store %arg8[%c0_38, %c0_39, %c0_40], %154 {strides = array<i32>} : memref<1x8x32xf32, #tpu.memory_space<vmem>>, vector<1x8x32xf32>,
    return
  }
  func.func @transform_0(%arg0: i32) -> (i32, i32, i32) {
    %c0_i32 = arith.constant 0 : i32
    %c0_i32_0 = arith.constant 0 : i32
    %c0_i32_1 = arith.constant 0 : i32
    return %arg0, %c0_i32, %c0_i32_0 : i32, i32, i32
  }
  func.func @transform_1(%arg0: i32) -> (i32, i32, i32) {
    %c0_i32 = arith.constant 0 : i32
    %c0_i32_0 = arith.constant 0 : i32
    %c0_i32_1 = arith.constant 0 : i32
    return %arg0, %c0_i32, %c0_i32_0 : i32, i32, i32
  }
  func.func @transform_2(%arg0: i32) -> (i32, i32) {
    %c0_i32 = arith.constant 0 : i32
    %c0_i32_0 = arith.constant 0 : i32
    %c0_i32_1 = arith.constant 0 : i32
    return %c0_i32, %c0_i32_0 : i32, i32
  }
  func.func @transform_3(%arg0: i32) -> (i32, i32) {
    %c0_i32 = arith.constant 0 : i32
    %c0_i32_0 = arith.constant 0 : i32
    %c0_i32_1 = arith.constant 0 : i32
    return %c0_i32, %c0_i32_0 : i32, i32
  }
  func.func @transform_4(%arg0: i32) -> (i32, i32) {
    %c0_i32 = arith.constant 0 : i32
    %c0_i32_0 = arith.constant 0 : i32
    %c0_i32_1 = arith.constant 0 : i32
    return %c0_i32, %c0_i32_0 : i32, i32
  }
  func.func @transform_5(%arg0: i32) -> (i32, i32) {
    %c0_i32 = arith.constant 0 : i32
    %c0_i32_0 = arith.constant 0 : i32
    %c0_i32_1 = arith.constant 0 : i32
    return %c0_i32, %c0_i32_0 : i32, i32
  }
  func.func @transform_6(%arg0: i32) -> (i32, i32) {
    %c0_i32 = arith.constant 0 : i32
    %c0_i32_0 = arith.constant 0 : i32
    %c0_i32_1 = arith.constant 0 : i32
    return %c0_i32, %c0_i32_0 : i32, i32
  }
  func.func @transform_7(%arg0: i32) -> (i32, i32, i32) {
    %c0_i32 = arith.constant 0 : i32
    %c0_i32_0 = arith.constant 0 : i32
    %c0_i32_1 = arith.constant 0 : i32
    return %arg0, %c0_i32, %c0_i32_0 : i32, i32, i32
  }
}

</mosaic_0001>

<llo_original>
// kernel: tpu_custom_call.1
$region0: #{tpu_custom_call.1}
  #allocation0 [shape = 'u32[]', space=smem, size = 0x4, offset = 0x4, fixed_abs, tag = 'smem constant byte address 0x4 - core index']
  #allocation1 [shape = 'u32[144,128]{1,0:T(1,128)}', space=vmem, size = 0x12000, scoped, tag = 'internal scratch']
  %s0 = inlined_call_operand.vmem [shape: f32[2,8,32], index: 0, kind: input, shape index: {}]
  %s1 = inlined_call_operand.hbm [shape: f32[2,1,8], index: 1, kind: input, shape index: {}]
  %s2 = inlined_call_operand.vmem [shape: bf16[32,96], index: 2, kind: input, shape index: {}]
  %s3 = inlined_call_operand.vmem [shape: bf16[32,32], index: 3, kind: input, shape index: {}]
  %s4 = inlined_call_operand.hbm [shape: bf16[32,64], index: 4, kind: input, shape index: {}]
  %s5 = inlined_call_operand.vmem [shape: bf16[64,32], index: 5, kind: input, shape index: {}]
  %s6 = inlined_call_operand.vmem [shape: f32[8,128], index: 6, kind: input, shape index: {}]
  %s7 = inlined_call_operand.hbm [shape: f32[2,8,32], index: 7, kind: output, shape index: {}]
  %s8 = sld [smem:[#allocation0]]
  $region69: #{tpu_custom_call.1} parent=0
    _
  %s10 = ssub.s32 1, %s8
  %s11 = scalar_select 0, %s10, %s8
  $region1: #{tpu_custom_call.1} parent=0
    #allocation2 [shape = 'u8[1024]{0}', space=vmem, size = 0x400, scoped, tag = 'input window, operand 1']
    #allocation3 [shape = 's32[2]{0}', space=sflag, size = 0x8, scoped, tag = 'scoped memory for tpu_custom_call.1']
    #allocation4 [shape = 's32[2]{0}', space=sflag, size = 0x8, scoped, tag = 'scoped memory for tpu_custom_call.1']
    #allocation5 [shape = 'u8[8192]{0}', space=vmem, size = 0x2000, scoped, tag = 'input window, operand 4, single buffered']
    #allocation6 [shape = 's32[1]{0}', space=sflag, size = 0x4, scoped, tag = 'scoped memory for tpu_custom_call.1']
    #allocation7 [shape = 'u8[8192]{0}', space=vmem, size = 0x2000, scoped, tag = 'output window, operand 0']
    %12 = vsyncpa [#allocation3], 0
    %s13 = scalar_lea.sflag [#allocation3], 1
    %14 = vsyncpa %s13, 0
    %15 = vsyncpa [#allocation6], 0
    %16 = vsyncpa [#allocation4], 0
    %s17 = scalar_lea.sflag [#allocation4], 1
    %18 = vsyncpa %s17, 0
    loop: start=0, step=1, limit=4
    $region2: #{tpu_custom_call.1} parent=1 // loop_pre_header
      _
    $region3: #{tpu_custom_call.1} parent=1 // loop_header
      %s20 = sphi 0, %s24
      %p21 = scmp.ge.s32.totalorder %s20, 4
      %s30 = sphi 0, %s32
      %s33 = sphi 0, %s30
      %s34 = sphi 0, %s33
      %s50 = sphi 0, %s34
      %s56 = sphi 0, %s58
      %s59 = sphi 0, %s56
      %s60 = sphi 0, %s59
      %s76 = sphi 0, %s60
      %s80 = sphi 0, %s80
      %s82 = sphi 0, %s80
      %s83 = sphi 0, %s82
      %s97 = sphi 0, %s83
      %s101 = sphi 0, %s101
      %s103 = sphi 0, %s101
      %s104 = sphi 0, %s103
      %s118 = sphi 0, %s104
      %s122 = sphi 0, %s122
      %s124 = sphi 0, %s122
      %s125 = sphi 0, %s124
      %s139 = sphi 0, %s125
      %s143 = sphi 0, %s143
      %s145 = sphi 0, %s143
      %s146 = sphi 0, %s145
      %s160 = sphi 0, %s146
      %s164 = sphi 0, %s164
      %s166 = sphi 0, %s164
      %s167 = sphi 0, %s166
      %s181 = sphi 0, %s167
      %s187 = sphi 0, %s189
      %s190 = sphi 0, %s187
      %s191 = sphi 0, %s190
      %s207 = sphi 0, %s191
    $region4: #{tpu_custom_call.1} parent=1 // loop_header_branch
      %23 = sbr.rel (%p21) target = $region8
    $region5: #{tpu_custom_call.1} parent=1 // loop_body
      %s25 = ssub.s32 %s20, 1
      %s26 = ssub.s32 %s20, 2
      %s27 = sadd.s32 %s20, 1
      %s28 = ssub.s32 %s20, %s27
      %p29 = scmp.eq.s32.totalorder %s28, 0
      %s31 = sadd.s32 %s30, 1
      %s32 = scalar_select %p29, %s30, %s31
      %p35 = pneg %p29
      %p36 = scmp.eq.s32.totalorder %s20, 1
      %p37 = por %p35, %p36
      %p38 = scmp.ne.s32.totalorder %s30, %s33
      %p39 = scmp.eq.s32.totalorder %s20, 0
      %p40 = por %p38, %p39
      %p41 = scmp.ne.s32.totalorder %s30, %s33
      %p42 = scmp.eq.s32.totalorder %s25, 1
      %p43 = por %p41, %p42
      %p44 = scmp.ne.s32.totalorder %s33, %s34
      %p45 = scmp.eq.s32.totalorder %s25, 0
      %p46 = por %p44, %p45
      %p47 = scmp.ne.s32.totalorder %s33, %s34
      %p48 = scmp.eq.s32.totalorder %s26, 1
      %p49 = por %p47, %p48
      %p51 = scmp.ne.s32.totalorder %s34, %s50
      %p52 = scmp.eq.s32.totalorder %s26, 0
      %p53 = por %p51, %p52
      %s54 = ssub.s32 %s20, %s27
      %p55 = scmp.eq.s32.totalorder %s54, 0
      %s57 = sadd.s32 %s56, 1
      %s58 = scalar_select %p55, %s56, %s57
      %p61 = pneg %p55
      %p62 = scmp.eq.s32.totalorder %s20, 1
      %p63 = por %p61, %p62
      %p64 = scmp.ne.s32.totalorder %s56, %s59
      %p65 = scmp.eq.s32.totalorder %s20, 0
      %p66 = por %p64, %p65
      %p67 = scmp.ne.s32.totalorder %s56, %s59
      %p68 = scmp.eq.s32.totalorder %s25, 1
      %p69 = por %p67, %p68
      %p70 = scmp.ne.s32.totalorder %s59, %s60
      %p71 = scmp.eq.s32.totalorder %s25, 0
      %p72 = por %p70, %p71
      %p73 = scmp.ne.s32.totalorder %s59, %s60
      %p74 = scmp.eq.s32.totalorder %s26, 1
      %p75 = por %p73, %p74
      %p77 = scmp.ne.s32.totalorder %s60, %s76
      %p78 = scmp.eq.s32.totalorder %s26, 0
      %p79 = por %p77, %p78
      %s81 = sadd.s32 %s80, 1
      %p84 = scmp.eq.s32.totalorder %s20, 1
      %p85 = scmp.ne.s32.totalorder %s80, %s82
      %p86 = scmp.eq.s32.totalorder %s20, 0
      %p87 = por %p85, %p86
      %p88 = scmp.ne.s32.totalorder %s80, %s82
      %p89 = scmp.eq.s32.totalorder %s25, 1
      %p90 = por %p88, %p89
      %p91 = scmp.ne.s32.totalorder %s82, %s83
      %p92 = scmp.eq.s32.totalorder %s25, 0
      %p93 = por %p91, %p92
      %p94 = scmp.ne.s32.totalorder %s82, %s83
      %p95 = scmp.eq.s32.totalorder %s26, 1
      %p96 = por %p94, %p95
      %p98 = scmp.ne.s32.totalorder %s83, %s97
      %p99 = scmp.eq.s32.totalorder %s26, 0
      %p100 = por %p98, %p99
      %s102 = sadd.s32 %s101, 1
      %p105 = scmp.eq.s32.totalorder %s20, 1
      %p106 = scmp.ne.s32.totalorder %s101, %s103
      %p107 = scmp.eq.s32.totalorder %s20, 0
      %p108 = por %p106, %p107
      %p109 = scmp.ne.s32.totalorder %s101, %s103
      %p110 = scmp.eq.s32.totalorder %s25, 1
      %p111 = por %p109, %p110
      %p112 = scmp.ne.s32.totalorder %s103, %s104
      %p113 = scmp.eq.s32.totalorder %s25, 0
      %p114 = por %p112, %p113
      %p115 = scmp.ne.s32.totalorder %s103, %s104
      %p116 = scmp.eq.s32.totalorder %s26, 1
      %p117 = por %p115, %p116
      %p119 = scmp.ne.s32.totalorder %s104, %s118
      %p120 = scmp.eq.s32.totalorder %s26, 0
      %p121 = por %p119, %p120
      %s123 = sadd.s32 %s122, 1
      %p126 = scmp.eq.s32.totalorder %s20, 1
      %p127 = scmp.ne.s32.totalorder %s122, %s124
      %p128 = scmp.eq.s32.totalorder %s20, 0
      %p129 = por %p127, %p128
      %p130 = scmp.ne.s32.totalorder %s122, %s124
      %p131 = scmp.eq.s32.totalorder %s25, 1
      %p132 = por %p130, %p131
      %p133 = scmp.ne.s32.totalorder %s124, %s125
      %p134 = scmp.eq.s32.totalorder %s25, 0
      %p135 = por %p133, %p134
      %p136 = scmp.ne.s32.totalorder %s124, %s125
      %p137 = scmp.eq.s32.totalorder %s26, 1
      %p138 = por %p136, %p137
      %p140 = scmp.ne.s32.totalorder %s125, %s139
      %p141 = scmp.eq.s32.totalorder %s26, 0
      %p142 = por %p140, %p141
      %s144 = sadd.s32 %s143, 1
      %p147 = scmp.eq.s32.totalorder %s20, 1
      %p148 = scmp.ne.s32.totalorder %s143, %s145
      %p149 = scmp.eq.s32.totalorder %s20, 0
      %p150 = por %p148, %p149
      %p151 = scmp.ne.s32.totalorder %s143, %s145
      %p152 = scmp.eq.s32.totalorder %s25, 1
      %p153 = por %p151, %p152
      %p154 = scmp.ne.s32.totalorder %s145, %s146
      %p155 = scmp.eq.s32.totalorder %s25, 0
      %p156 = por %p154, %p155
      %p157 = scmp.ne.s32.totalorder %s145, %s146
      %p158 = scmp.eq.s32.totalorder %s26, 1
      %p159 = por %p157, %p158
      %p161 = scmp.ne.s32.totalorder %s146, %s160
      %p162 = scmp.eq.s32.totalorder %s26, 0
      %p163 = por %p161, %p162
      %s165 = sadd.s32 %s164, 1
      %p168 = scmp.eq.s32.totalorder %s20, 1
      %p169 = scmp.ne.s32.totalorder %s164, %s166
      %p170 = scmp.eq.s32.totalorder %s20, 0
      %p171 = por %p169, %p170
      %p172 = scmp.ne.s32.totalorder %s164, %s166
      %p173 = scmp.eq.s32.totalorder %s25, 1
      %p174 = por %p172, %p173
      %p175 = scmp.ne.s32.totalorder %s166, %s167
      %p176 = scmp.eq.s32.totalorder %s25, 0
      %p177 = por %p175, %p176
      %p178 = scmp.ne.s32.totalorder %s166, %s167
      %p179 = scmp.eq.s32.totalorder %s26, 1
      %p180 = por %p178, %p179
      %p182 = scmp.ne.s32.totalorder %s167, %s181
      %p183 = scmp.eq.s32.totalorder %s26, 0
      %p184 = por %p182, %p183
      %s185 = ssub.s32 %s20, %s27
      %p186 = scmp.eq.s32.totalorder %s185, 0
      %s188 = sadd.s32 %s187, 1
      %s189 = scalar_select %p186, %s187, %s188
      %p192 = pneg %p186
      %p193 = scmp.eq.s32.totalorder %s20, 1
      %p194 = por %p192, %p193
      %p195 = scmp.ne.s32.totalorder %s187, %s190
      %p196 = scmp.eq.s32.totalorder %s20, 0
      %p197 = por %p195, %p196
      %p198 = scmp.ne.s32.totalorder %s187, %s190
      %p199 = scmp.eq.s32.totalorder %s25, 1
      %p200 = por %p198, %p199
      %p201 = scmp.ne.s32.totalorder %s190, %s191
      %p202 = scmp.eq.s32.totalorder %s25, 0
      %p203 = por %p201, %p202
      %p204 = scmp.ne.s32.totalorder %s190, %s191
      %p205 = scmp.eq.s32.totalorder %s26, 1
      %p206 = por %p204, %p205
      %p208 = scmp.ne.s32.totalorder %s191, %s207
      %p209 = scmp.eq.s32.totalorder %s26, 0
      %p210 = por %p208, %p209
      %p211 = scmp.le.s32.totalorder 1, %s20
      %p212 = scmp.lt.s32.totalorder %s20, 3
      %p213 = pnand %p211, %p212
      %p214 = pneg %p213
      // Predicated region
      $region9: #{tpu_custom_call.1} parent=5 // pred_check
        _
      $region10: #{tpu_custom_call.1} parent=5 // pred_check_branch
        %216 = sbr.rel (%p213) target = $region12
      $region11: #{tpu_custom_call.1} parent=5 // pred_region
        %s217 = ssub.s32 %s20, 1
        // Predicated region
        $region13: #{tpu_custom_call.1} parent=11 // pred_check
          %p218 = pneg %p93
        $region14: #{tpu_custom_call.1} parent=11 // pred_check_branch
          %220 = sbr.rel (%p218) target = $region16
        $region15: #{tpu_custom_call.1} parent=11 // pred_region
          _
        $region16: #{tpu_custom_call.1} parent=11 // pred_fallthru
          _
        // Predicated region
        $region17: #{tpu_custom_call.1} parent=11 // pred_check
          %p221 = pneg %p114
        $region18: #{tpu_custom_call.1} parent=11 // pred_check_branch
          %223 = sbr.rel (%p221) target = $region20
        $region19: #{tpu_custom_call.1} parent=11 // pred_region
          _
        $region20: #{tpu_custom_call.1} parent=11 // pred_fallthru
          _
        // Predicated region
        $region21: #{tpu_custom_call.1} parent=11 // pred_check
          %p224 = pneg %p135
        $region22: #{tpu_custom_call.1} parent=11 // pred_check_branch
          %226 = sbr.rel (%p224) target = $region24
        $region23: #{tpu_custom_call.1} parent=11 // pred_region
          %s228 = ssub.s32 256, 256
          %229 = vsyncadd [#allocation6], %s228
          %s230 = sshll.u32 [#allocation5], 4
          %s231 = int_to_ptr.vmem [resolvable:$true] %s230
          %236 = dma.hbm_to_vmem [thread:$0]  %s4, 256, %s231, [#allocation6], 64, 64, 4
        $region24: #{tpu_custom_call.1} parent=11 // pred_fallthru
          _
        // Predicated region
        $region25: #{tpu_custom_call.1} parent=11 // pred_check
          %p237 = pneg %p156
        $region26: #{tpu_custom_call.1} parent=11 // pred_check_branch
          %239 = sbr.rel (%p237) target = $region28
        $region27: #{tpu_custom_call.1} parent=11 // pred_region
          _
        $region28: #{tpu_custom_call.1} parent=11 // pred_fallthru
          _
        // Predicated region
        $region29: #{tpu_custom_call.1} parent=11 // pred_check
          %p240 = pneg %p177
        $region30: #{tpu_custom_call.1} parent=11 // pred_check_branch
          %242 = sbr.rel (%p240) target = $region32
        $region31: #{tpu_custom_call.1} parent=11 // pred_region
          _
        $region32: #{tpu_custom_call.1} parent=11 // pred_fallthru
          _
      $region12: #{tpu_custom_call.1} parent=5 // pred_fallthru
        _
      %p243 = scmp.lt.s32.totalorder %s20, 2
      // Predicated region
      $region33: #{tpu_custom_call.1} parent=5 // pred_check
        %p244 = pneg %p243
      $region34: #{tpu_custom_call.1} parent=5 // pred_check_branch
        %246 = sbr.rel (%p244) target = $region36
      $region35: #{tpu_custom_call.1} parent=5 // pred_region
        // Predicated region
        $region37: #{tpu_custom_call.1} parent=35 // pred_check
          %p247 = pneg %p40
        $region38: #{tpu_custom_call.1} parent=35 // pred_check_branch
          %249 = sbr.rel (%p247) target = $region40
        $region39: #{tpu_custom_call.1} parent=35 // pred_region
          %p250 = scmp.lt.s32.totalorder %s20, 1
          %s251 = scalar_select %p250, %s20, 1
          %s252 = smul.addr %s251, 8
          %s253 = scalar_lea.vmem %s0, %s252
        $region40: #{tpu_custom_call.1} parent=35 // pred_fallthru
          _
        // Predicated region
        $region41: #{tpu_custom_call.1} parent=35 // pred_check
          %p254 = pneg %p66
        $region42: #{tpu_custom_call.1} parent=35 // pred_check_branch
          %256 = sbr.rel (%p254) target = $region44
        $region43: #{tpu_custom_call.1} parent=35 // pred_region
          %s257 = sand.u32 %s56, 1
          %s258 = scalar_lea.sflag [#allocation3], %s257
          %s259 = sand.u32 %s56, 1
          %s260 = scalar_lea.vmem [#allocation2], %s259
          %s262 = ssub.s32 16, 16
          %263 = vsyncadd %s258, %s262
          %s264 = smul.addr %s20, 16
          %s265 = scalar_lea.hbm %s1, %s264
          %s267 = sshll.u32 %s260, 4
          %s268 = int_to_ptr.vmem [resolvable:$true] %s267
          %270 = dma.hbm_to_vmem [thread:$0]  %s265, 16, %s268, %s258
        $region44: #{tpu_custom_call.1} parent=35 // pred_fallthru
          _
      $region36: #{tpu_custom_call.1} parent=5 // pred_fallthru
        _
      %p271 = scmp.le.s32.totalorder 1, %s20
      %p272 = scmp.lt.s32.totalorder %s20, 3
      %p273 = pnand %p271, %p272
      %p274 = pneg %p273
      // Predicated region
      $region45: #{tpu_custom_call.1} parent=5 // pred_check
        _
      $region46: #{tpu_custom_call.1} parent=5 // pred_check_branch
        %276 = sbr.rel (%p273) target = $region48
      $region47: #{tpu_custom_call.1} parent=5 // pred_region
        %s277 = ssub.s32 %s20, 1
        %s278 = sand.u32 %s59, 1
        %s279 = scalar_lea.sflag [#allocation3], %s278
        %s280 = sand.u32 %s59, 1
        %s281 = scalar_lea.vmem [#allocation2], %s280
        // Predicated region
        $region49: #{tpu_custom_call.1} parent=47 // pred_check
          %p282 = pneg %p72
        $region50: #{tpu_custom_call.1} parent=47 // pred_check_branch
          %284 = sbr.rel (%p282) target = $region52
        $region51: #{tpu_custom_call.1} parent=47 // pred_region
          %285 = dma.done %s279, 16
        $region52: #{tpu_custom_call.1} parent=47 // pred_fallthru
          _
        // Predicated region
        $region53: #{tpu_custom_call.1} parent=47 // pred_check
          %p286 = pneg %p135
        $region54: #{tpu_custom_call.1} parent=47 // pred_check_branch
          %288 = sbr.rel (%p286) target = $region56
        $region55: #{tpu_custom_call.1} parent=47 // pred_region
          %289 = dma.done [#allocation6], 256
        $region56: #{tpu_custom_call.1} parent=47 // pred_fallthru
          _
        %p290 = scmp.lt.s32.totalorder %s25, 1
        %s291 = scalar_select %p290, %s25, 1
        %s292 = smul.addr %s291, 8
        %s293 = scalar_lea.vmem %s0, %s292
        %p294 = pneg %p46
        %p295 = pneg %p43
        %s296 = sand.u32 %s59, 1
        %s297 = scalar_lea.sflag [#allocation3], %s296
        %s298 = sand.u32 %s59, 1
        %s299 = scalar_lea.vmem [#allocation2], %s298
        %p300 = pneg %p72
        %p301 = pneg %p69
        %p302 = pneg %p93
        %p303 = pneg %p90
        %p304 = pneg %p114
        %p305 = pneg %p111
        %p306 = pneg %p135
        %p307 = pneg %p132
        %p308 = pneg %p156
        %p309 = pneg %p153
        %p310 = pneg %p177
        %p311 = pneg %p174
        %p312 = pneg %p203
        %p313 = pneg %p200
        %s314 = sand.u32 %s190, 1
        %s315 = scalar_lea.sflag [#allocation4], %s314
        %s316 = sand.u32 %s190, 1
        %s317 = smul.addr %s316, 8
        %s318 = scalar_lea.vmem [#allocation7], %s317
        %p319 = scmp.lt.s32.totalorder %s25, 1
        %s320 = scalar_select %p319, %s25, 1
        %s321 = smul.addr %s320, 8
        %s322 = scalar_lea.vmem %s0, %s321
        %v324 = vld [vmem:[%s322] sm:$0xff]
        %v325 = vld [vmem:[%s6] sm:$0xff]
        %v326 = vld [vmem:[%s281] sm:$0x1]
        %v327 = vsub.f32 1.0, %v326
        %v328 = vmul.f32 %v327, -1e+09
        %v329 = vpack.c.bf16 %v324, %v324
        %v330 = vld [vmem:[%s2] sm:$0xf]
        %v331 = vld [vmem:[%s2 + $0x4] sm:$0xf]
        %v332 = vld [vmem:[%s2 + $0x8] sm:$0xf]
        %v333 = vld [vmem:[%s2 + $0xc] sm:$0xf]
        %v338 = vunpack.c.l.b16 %v330
        %v339 = vunpack.c.l.b16 %v331
        %v340 = vunpack.c.l.b16 %v332
        %v341 = vunpack.c.l.b16 %v333
        %v342 = vpack.c.b16 %v339, %v338
        %v343 = vpack.c.b16 %v341, %v340
        %vm346 = vcmask 261120
        %v348 = vsel %vm346, %v329, 0
        %350 = vmatprep.subr.bf16.mxu0 0
        %351 = vmatpush1.bf16.msra.mxu0 0
        %352 = vmatprep.subr.bf16.mxu0 0
        %353 = vmatpush1.bf16.msra.mxu0 0
        %354 = vmatprep.subr.bf16.mxu0 0
        %355 = vmatpush1.bf16.msra.mxu0 0
        %356 = vmatprep.subr.bf16.mxu0 0
        %357 = vmatpush1.bf16.msra.mxu0 0
        %358 = vmatprep.subr.bf16.mxu0 0
        %359 = vmatpush1.bf16.msra.mxu0 0
        %360 = vmatprep.subr.bf16.mxu0 0
        %361 = vmatpush1.bf16.msra.mxu0 0
        %362 = vmatprep.subr.bf16.mxu0 0
        %363 = vmatpush1.bf16.msra.mxu0 %v343
        %364 = vmatprep.subr.bf16.mxu0 0
        %365 = vmatpush1.bf16.msra.mxu0 %v342
        %366 = vmatprep.subr.bf16.mxu0 0
        %367 = vmatpush2.bf16.msra.mxu0 0
        %368 = vmatprep.subr.bf16.mxu0 0
        %369 = vmatpush2.bf16.msra.mxu0 0
        %370 = vmatprep.subr.bf16.mxu0 0
        %371 = vmatpush2.bf16.msra.mxu0 0
        %372 = vmatprep.subr.bf16.mxu0 0
        %373 = vmatpush2.bf16.msra.mxu0 0
        %374 = vmatprep.subr.bf16.mxu0 0
        %375 = vmatpush2.bf16.msra.mxu0 0
        %376 = vmatprep.subr.bf16.mxu0 0
        %377 = vmatpush2.bf16.msra.mxu0 0
        %378 = vmatprep.subr.bf16.mxu0 0
        %379 = vmatpush2.bf16.msra.mxu0 0
        %380 = vmatprep.subr.bf16.mxu0 0
        %381 = vmatpush2.bf16.msra.mxu0 0
        %382 = vmatprep.mubr.bf16.mxu0 0
        %383 = vmatmul.mubr.bf16.gmra.mxu0 %v348
        %v384 = vpop.f32.mrf.mxu0
        %v385 = vadd.f32 0.0, %v384
        %v386 = vpop.f32.mrf.mxu0
        %v387 = vpop.f32.mrf.mxu0
        %v388 = vpop.f32.mrf.mxu0
        %389 = vdwg.mxu0
        %391 = vrot.lane.b32.xlu0 %v385, 120
        %v392 = vpop.permute.xlu0 %391
        %394 = vrot.lane.b32.xlu0 %v385, 112
        %v395 = vpop.permute.xlu0 %394
        %397 = vrot.lane.b32.xlu0 %v385, 104
        %v398 = vpop.permute.xlu0 %397
        %v400 = vpack.c.bf16 %v385, %v385
        %v401 = vpack.c.bf16 %v392, %v392
        %v402 = vpack.c.bf16 %v395, %v395
        %v403 = vpack.c.bf16 %v398, %v398
        %v405 = vlaneseq
        %v406 = vshrl.u32 %v405, 7
        %v407 = vsub.s32 0, %v406
        %v408 = vrot.slane %v328, %v407
        %411 = vrot.lane.b32.xlu0 %v400, 96
        %v412 = vpop.permute.xlu0 %411
        %vm413 = vcmask 64512
        %v415 = vsel %vm413, %v400, 0
        %v418 = vsel %vm413, %v412, 0
        %420 = vmatprep.subr.bf16.mxu0 0
        %421 = vmatpush1.bf16.xpose.msra.mxu0 0
        %422 = vmatprep.subr.bf16.mxu0 0
        %423 = vmatpush1.bf16.xpose.msra.mxu0 0
        %424 = vmatprep.subr.bf16.mxu0 0
        %425 = vmatpush1.bf16.xpose.msra.mxu0 0
        %426 = vmatprep.subr.bf16.mxu0 0
        %427 = vmatpush1.bf16.xpose.msra.mxu0 0
        %428 = vmatprep.subr.bf16.mxu0 0
        %429 = vmatpush1.bf16.xpose.msra.mxu0 0
        %430 = vmatprep.subr.bf16.mxu0 0
        %431 = vmatpush1.bf16.xpose.msra.mxu0 0
        %432 = vmatprep.subr.bf16.mxu0 0
        %433 = vmatpush1.bf16.xpose.msra.mxu0 0
        %434 = vmatprep.subr.bf16.mxu0 0
        %435 = vmatpush1.bf16.xpose.msra.mxu0 %v418
        %436 = vmatprep.subr.bf16.mxu0 0
        %437 = vmatpush2.bf16.xpose.msra.mxu0 0
        %438 = vmatprep.subr.bf16.mxu0 0
        %439 = vmatpush2.bf16.xpose.msra.mxu0 0
        %440 = vmatprep.subr.bf16.mxu0 0
        %441 = vmatpush2.bf16.xpose.msra.mxu0 0
        %442 = vmatprep.subr.bf16.mxu0 0
        %443 = vmatpush2.bf16.xpose.msra.mxu0 0
        %444 = vmatprep.subr.bf16.mxu0 0
        %445 = vmatpush2.bf16.xpose.msra.mxu0 0
        %446 = vmatprep.subr.bf16.mxu0 0
        %447 = vmatpush2.bf16.xpose.msra.mxu0 0
        %448 = vmatprep.subr.bf16.mxu0 0
        %449 = vmatpush2.bf16.xpose.msra.mxu0 0
        %450 = vmatprep.subr.bf16.mxu0 0
        %451 = vmatpush2.bf16.xpose.msra.mxu0 0
        %452 = vmatprep.mubr.bf16.mxu0 0
        %453 = vmatmul.mubr.bf16.gmra.mxu0 %v415
        %v454 = vpop.f32.mrf.mxu0
        %v455 = vadd.f32 %v408, %v454
        %v456 = vpop.f32.mrf.mxu0
        %v457 = vpop.f32.mrf.mxu0
        %v458 = vpop.f32.mrf.mxu0
        %459 = vdwg.mxu0
        %461 = vrot.lane.b32.xlu0 %v401, 96
        %v462 = vpop.permute.xlu0 %461
        %v464 = vsel %vm413, %v401, 0
        %v467 = vsel %vm413, %v462, 0
        %469 = vmatprep.subr.bf16.mxu0 0
        %470 = vmatpush1.bf16.xpose.msra.mxu0 0
        %471 = vmatprep.subr.bf16.mxu0 0
        %472 = vmatpush1.bf16.xpose.msra.mxu0 0
        %473 = vmatprep.subr.bf16.mxu0 0
        %474 = vmatpush1.bf16.xpose.msra.mxu0 0
        %475 = vmatprep.subr.bf16.mxu0 0
        %476 = vmatpush1.bf16.xpose.msra.mxu0 0
        %477 = vmatprep.subr.bf16.mxu0 0
        %478 = vmatpush1.bf16.xpose.msra.mxu0 0
        %479 = vmatprep.subr.bf16.mxu0 0
        %480 = vmatpush1.bf16.xpose.msra.mxu0 0
        %481 = vmatprep.subr.bf16.mxu0 0
        %482 = vmatpush1.bf16.xpose.msra.mxu0 0
        %483 = vmatprep.subr.bf16.mxu0 0
        %484 = vmatpush1.bf16.xpose.msra.mxu0 %v467
        %485 = vmatprep.subr.bf16.mxu0 0
        %486 = vmatpush2.bf16.xpose.msra.mxu0 0
        %487 = vmatprep.subr.bf16.mxu0 0
        %488 = vmatpush2.bf16.xpose.msra.mxu0 0
        %489 = vmatprep.subr.bf16.mxu0 0
        %490 = vmatpush2.bf16.xpose.msra.mxu0 0
        %491 = vmatprep.subr.bf16.mxu0 0
        %492 = vmatpush2.bf16.xpose.msra.mxu0 0
        %493 = vmatprep.subr.bf16.mxu0 0
        %494 = vmatpush2.bf16.xpose.msra.mxu0 0
        %495 = vmatprep.subr.bf16.mxu0 0
        %496 = vmatpush2.bf16.xpose.msra.mxu0 0
        %497 = vmatprep.subr.bf16.mxu0 0
        %498 = vmatpush2.bf16.xpose.msra.mxu0 0
        %499 = vmatprep.subr.bf16.mxu0 0
        %500 = vmatpush2.bf16.xpose.msra.mxu0 0
        %501 = vmatprep.mubr.bf16.mxu0 0
        %502 = vmatmul.mubr.bf16.gmra.mxu0 %v464
        %v503 = vpop.f32.mrf.mxu0
        %v504 = vadd.f32 %v408, %v503
        %v505 = vpop.f32.mrf.mxu0
        %v506 = vpop.f32.mrf.mxu0
        %v507 = vpop.f32.mrf.mxu0
        %508 = vdwg.mxu0
        %510 = vrot.lane.b32.xlu0 %v402, 96
        %v511 = vpop.permute.xlu0 %510
        %v513 = vsel %vm413, %v402, 0
        %v516 = vsel %vm413, %v511, 0
        %518 = vmatprep.subr.bf16.mxu0 0
        %519 = vmatpush1.bf16.xpose.msra.mxu0 0
        %520 = vmatprep.subr.bf16.mxu0 0
        %521 = vmatpush1.bf16.xpose.msra.mxu0 0
        %522 = vmatprep.subr.bf16.mxu0 0
        %523 = vmatpush1.bf16.xpose.msra.mxu0 0
        %524 = vmatprep.subr.bf16.mxu0 0
        %525 = vmatpush1.bf16.xpose.msra.mxu0 0
        %526 = vmatprep.subr.bf16.mxu0 0
        %527 = vmatpush1.bf16.xpose.msra.mxu0 0
        %528 = vmatprep.subr.bf16.mxu0 0
        %529 = vmatpush1.bf16.xpose.msra.mxu0 0
        %530 = vmatprep.subr.bf16.mxu0 0
        %531 = vmatpush1.bf16.xpose.msra.mxu0 0
        %532 = vmatprep.subr.bf16.mxu0 0
        %533 = vmatpush1.bf16.xpose.msra.mxu0 %v516
        %534 = vmatprep.subr.bf16.mxu0 0
        %535 = vmatpush2.bf16.xpose.msra.mxu0 0
        %536 = vmatprep.subr.bf16.mxu0 0
        %537 = vmatpush2.bf16.xpose.msra.mxu0 0
        %538 = vmatprep.subr.bf16.mxu0 0
        %539 = vmatpush2.bf16.xpose.msra.mxu0 0
        %540 = vmatprep.subr.bf16.mxu0 0
        %541 = vmatpush2.bf16.xpose.msra.mxu0 0
        %542 = vmatprep.subr.bf16.mxu0 0
        %543 = vmatpush2.bf16.xpose.msra.mxu0 0
        %544 = vmatprep.subr.bf16.mxu0 0
        %545 = vmatpush2.bf16.xpose.msra.mxu0 0
        %546 = vmatprep.subr.bf16.mxu0 0
        %547 = vmatpush2.bf16.xpose.msra.mxu0 0
        %548 = vmatprep.subr.bf16.mxu0 0
        %549 = vmatpush2.bf16.xpose.msra.mxu0 0
        %550 = vmatprep.mubr.bf16.mxu0 0
        %551 = vmatmul.mubr.bf16.gmra.mxu0 %v513
        %v552 = vpop.f32.mrf.mxu0
        %v553 = vadd.f32 %v408, %v552
        %v554 = vpop.f32.mrf.mxu0
        %v555 = vpop.f32.mrf.mxu0
        %v556 = vpop.f32.mrf.mxu0
        %557 = vdwg.mxu0
        %559 = vrot.lane.b32.xlu0 %v403, 96
        %v560 = vpop.permute.xlu0 %559
        %v562 = vsel %vm413, %v403, 0
        %v565 = vsel %vm413, %v560, 0
        %567 = vmatprep.subr.bf16.mxu0 0
        %568 = vmatpush1.bf16.xpose.msra.mxu0 0
        %569 = vmatprep.subr.bf16.mxu0 0
        %570 = vmatpush1.bf16.xpose.msra.mxu0 0
        %571 = vmatprep.subr.bf16.mxu0 0
        %572 = vmatpush1.bf16.xpose.msra.mxu0 0
        %573 = vmatprep.subr.bf16.mxu0 0
        %574 = vmatpush1.bf16.xpose.msra.mxu0 0
        %575 = vmatprep.subr.bf16.mxu0 0
        %576 = vmatpush1.bf16.xpose.msra.mxu0 0
        %577 = vmatprep.subr.bf16.mxu0 0
        %578 = vmatpush1.bf16.xpose.msra.mxu0 0
        %579 = vmatprep.subr.bf16.mxu0 0
        %580 = vmatpush1.bf16.xpose.msra.mxu0 0
        %581 = vmatprep.subr.bf16.mxu0 0
        %582 = vmatpush1.bf16.xpose.msra.mxu0 %v565
        %583 = vmatprep.subr.bf16.mxu0 0
        %584 = vmatpush2.bf16.xpose.msra.mxu0 0
        %585 = vmatprep.subr.bf16.mxu0 0
        %586 = vmatpush2.bf16.xpose.msra.mxu0 0
        %587 = vmatprep.subr.bf16.mxu0 0
        %588 = vmatpush2.bf16.xpose.msra.mxu0 0
        %589 = vmatprep.subr.bf16.mxu0 0
        %590 = vmatpush2.bf16.xpose.msra.mxu0 0
        %591 = vmatprep.subr.bf16.mxu0 0
        %592 = vmatpush2.bf16.xpose.msra.mxu0 0
        %593 = vmatprep.subr.bf16.mxu0 0
        %594 = vmatpush2.bf16.xpose.msra.mxu0 0
        %595 = vmatprep.subr.bf16.mxu0 0
        %596 = vmatpush2.bf16.xpose.msra.mxu0 0
        %597 = vmatprep.subr.bf16.mxu0 0
        %598 = vmatpush2.bf16.xpose.msra.mxu0 0
        %599 = vmatprep.mubr.bf16.mxu0 0
        %600 = vmatmul.mubr.bf16.gmra.mxu0 %v562
        %v601 = vpop.f32.mrf.mxu0
        %v602 = vadd.f32 %v408, %v601
        %v603 = vpop.f32.mrf.mxu0
        %v604 = vpop.f32.mrf.mxu0
        %v605 = vpop.f32.mrf.mxu0
        %606 = vdwg.mxu0
        %v607 = vsel %vm413, %v455, -inf
        %608 = vmax.xlane.f32.xlu0 %v607
        %v609 = vpop.xlane.xlu0 %608
        %v610 = vsel %vm413, %v504, -inf
        %611 = vmax.xlane.f32.xlu0 %v610
        %v612 = vpop.xlane.xlu0 %611
        %v613 = vsel %vm413, %v553, -inf
        %614 = vmax.xlane.f32.xlu0 %v613
        %v615 = vpop.xlane.xlu0 %614
        %v616 = vsel %vm413, %v602, -inf
        %617 = vmax.xlane.f32.xlu0 %v616
        %v618 = vpop.xlane.xlu0 %617
        %v619 = vsub.f32 %v455, %v609
        %v620 = vsub.f32 %v504, %v612
        %v621 = vsub.f32 %v553, %v615
        %v622 = vsub.f32 %v602, %v618
        %v623 = vmul.f32 %v619, 1.442695
        %v624 = vpow.pop %v623
        %v625 = vmul.f32 %v620, 1.442695
        %v626 = vpow.pop %v625
        %v627 = vmul.f32 %v621, 1.442695
        %v628 = vpow.pop %v627
        %v629 = vmul.f32 %v622, 1.442695
        %v630 = vpow.pop %v629
        %v631 = vsel %vm413, %v624, 0.0
        %632 = vadd.xlane.f32.xlu0 %v631
        %v633 = vpop.xlane.xlu0 %632
        %v634 = vsel %vm413, %v626, 0.0
        %635 = vadd.xlane.f32.xlu0 %v634
        %v636 = vpop.xlane.xlu0 %635
        %v637 = vsel %vm413, %v628, 0.0
        %638 = vadd.xlane.f32.xlu0 %v637
        %v639 = vpop.xlane.xlu0 %638
        %v640 = vsel %vm413, %v630, 0.0
        %641 = vadd.xlane.f32.xlu0 %v640
        %v642 = vpop.xlane.xlu0 %641
        %v643 = vrcp.pop %v633
        %v644 = vrcp.pop %v636
        %v645 = vrcp.pop %v639
        %v646 = vrcp.pop %v642
        %v647 = vmul.f32 %v624, %v643
        %v648 = vmul.f32 %v626, %v644
        %v649 = vmul.f32 %v628, %v645
        %v650 = vmul.f32 %v630, %v646
        %v651 = vpack.c.bf16 %v647, %v647
        %v652 = vpack.c.bf16 %v648, %v648
        %v653 = vpack.c.bf16 %v649, %v649
        %v654 = vpack.c.bf16 %v650, %v650
        %655 = vrot.lane.b32.xlu0 %v400, 64
        %v656 = vpop.permute.xlu0 %655
        %v658 = vsel %vm413, %v651, 0
        %vm660 = vcmask 1043456
        %v662 = vsel %vm660, %v656, 0
        %664 = vmatprep.subr.bf16.mxu0 0
        %665 = vmatpush1.bf16.msra.mxu0 0
        %666 = vmatprep.subr.bf16.mxu0 0
        %667 = vmatpush1.bf16.msra.mxu0 0
        %668 = vmatprep.subr.bf16.mxu0 0
        %669 = vmatpush1.bf16.msra.mxu0 0
        %670 = vmatprep.subr.bf16.mxu0 0
        %671 = vmatpush1.bf16.msra.mxu0 0
        %672 = vmatprep.subr.bf16.mxu0 0
        %673 = vmatpush1.bf16.msra.mxu0 0
        %674 = vmatprep.subr.bf16.mxu0 0
        %675 = vmatpush1.bf16.msra.mxu0 0
        %676 = vmatprep.subr.bf16.mxu0 0
        %677 = vmatpush1.bf16.msra.mxu0 0
        %678 = vmatprep.subr.bf16.mxu0 0
        %679 = vmatpush1.bf16.msra.mxu0 %v662
        %680 = vmatprep.subr.bf16.mxu0 0
        %681 = vmatpush2.bf16.msra.mxu0 0
        %682 = vmatprep.subr.bf16.mxu0 0
        %683 = vmatpush2.bf16.msra.mxu0 0
        %684 = vmatprep.subr.bf16.mxu0 0
        %685 = vmatpush2.bf16.msra.mxu0 0
        %686 = vmatprep.subr.bf16.mxu0 0
        %687 = vmatpush2.bf16.msra.mxu0 0
        %688 = vmatprep.subr.bf16.mxu0 0
        %689 = vmatpush2.bf16.msra.mxu0 0
        %690 = vmatprep.subr.bf16.mxu0 0
        %691 = vmatpush2.bf16.msra.mxu0 0
        %692 = vmatprep.subr.bf16.mxu0 0
        %693 = vmatpush2.bf16.msra.mxu0 0
        %694 = vmatprep.subr.bf16.mxu0 0
        %695 = vmatpush2.bf16.msra.mxu0 0
        %696 = vmatprep.mubr.bf16.mxu0 0
        %697 = vmatmul.mubr.bf16.gmra.mxu0 %v658
        %v698 = vpop.f32.mrf.mxu0
        %v699 = vadd.f32 0.0, %v698
        %v700 = vpop.f32.mrf.mxu0
        %v701 = vpop.f32.mrf.mxu0
        %v702 = vpop.f32.mrf.mxu0
        %703 = vdwg.mxu0
        %704 = vrot.lane.b32.xlu0 %v401, 64
        %v705 = vpop.permute.xlu0 %704
        %v707 = vsel %vm413, %v652, 0
        %v710 = vsel %vm660, %v705, 0
        %712 = vmatprep.subr.bf16.mxu0 0
        %713 = vmatpush1.bf16.msra.mxu0 0
        %714 = vmatprep.subr.bf16.mxu0 0
        %715 = vmatpush1.bf16.msra.mxu0 0
        %716 = vmatprep.subr.bf16.mxu0 0
        %717 = vmatpush1.bf16.msra.mxu0 0
        %718 = vmatprep.subr.bf16.mxu0 0
        %719 = vmatpush1.bf16.msra.mxu0 0
        %720 = vmatprep.subr.bf16.mxu0 0
        %721 = vmatpush1.bf16.msra.mxu0 0
        %722 = vmatprep.subr.bf16.mxu0 0
        %723 = vmatpush1.bf16.msra.mxu0 0
        %724 = vmatprep.subr.bf16.mxu0 0
        %725 = vmatpush1.bf16.msra.mxu0 0
        %726 = vmatprep.subr.bf16.mxu0 0
        %727 = vmatpush1.bf16.msra.mxu0 %v710
        %728 = vmatprep.subr.bf16.mxu0 0
        %729 = vmatpush2.bf16.msra.mxu0 0
        %730 = vmatprep.subr.bf16.mxu0 0
        %731 = vmatpush2.bf16.msra.mxu0 0
        %732 = vmatprep.subr.bf16.mxu0 0
        %733 = vmatpush2.bf16.msra.mxu0 0
        %734 = vmatprep.subr.bf16.mxu0 0
        %735 = vmatpush2.bf16.msra.mxu0 0
        %736 = vmatprep.subr.bf16.mxu0 0
        %737 = vmatpush2.bf16.msra.mxu0 0
        %738 = vmatprep.subr.bf16.mxu0 0
        %739 = vmatpush2.bf16.msra.mxu0 0
        %740 = vmatprep.subr.bf16.mxu0 0
        %741 = vmatpush2.bf16.msra.mxu0 0
        %742 = vmatprep.subr.bf16.mxu0 0
        %743 = vmatpush2.bf16.msra.mxu0 0
        %744 = vmatprep.mubr.bf16.mxu0 0
        %745 = vmatmul.mubr.bf16.gmra.mxu0 %v707
        %v746 = vpop.f32.mrf.mxu0
        %v747 = vadd.f32 0.0, %v746
        %v748 = vpop.f32.mrf.mxu0
        %v749 = vpop.f32.mrf.mxu0
        %v750 = vpop.f32.mrf.mxu0
        %751 = vdwg.mxu0
        %752 = vrot.lane.b32.xlu0 %v402, 64
        %v753 = vpop.permute.xlu0 %752
        %v755 = vsel %vm413, %v653, 0
        %v758 = vsel %vm660, %v753, 0
        %760 = vmatprep.subr.bf16.mxu0 0
        %761 = vmatpush1.bf16.msra.mxu0 0
        %762 = vmatprep.subr.bf16.mxu0 0
        %763 = vmatpush1.bf16.msra.mxu0 0
        %764 = vmatprep.subr.bf16.mxu0 0
        %765 = vmatpush1.bf16.msra.mxu0 0
        %766 = vmatprep.subr.bf16.mxu0 0
        %767 = vmatpush1.bf16.msra.mxu0 0
        %768 = vmatprep.subr.bf16.mxu0 0
        %769 = vmatpush1.bf16.msra.mxu0 0
        %770 = vmatprep.subr.bf16.mxu0 0
        %771 = vmatpush1.bf16.msra.mxu0 0
        %772 = vmatprep.subr.bf16.mxu0 0
        %773 = vmatpush1.bf16.msra.mxu0 0
        %774 = vmatprep.subr.bf16.mxu0 0
        %775 = vmatpush1.bf16.msra.mxu0 %v758
        %776 = vmatprep.subr.bf16.mxu0 0
        %777 = vmatpush2.bf16.msra.mxu0 0
        %778 = vmatprep.subr.bf16.mxu0 0
        %779 = vmatpush2.bf16.msra.mxu0 0
        %780 = vmatprep.subr.bf16.mxu0 0
        %781 = vmatpush2.bf16.msra.mxu0 0
        %782 = vmatprep.subr.bf16.mxu0 0
        %783 = vmatpush2.bf16.msra.mxu0 0
        %784 = vmatprep.subr.bf16.mxu0 0
        %785 = vmatpush2.bf16.msra.mxu0 0
        %786 = vmatprep.subr.bf16.mxu0 0
        %787 = vmatpush2.bf16.msra.mxu0 0
        %788 = vmatprep.subr.bf16.mxu0 0
        %789 = vmatpush2.bf16.msra.mxu0 0
        %790 = vmatprep.subr.bf16.mxu0 0
        %791 = vmatpush2.bf16.msra.mxu0 0
        %792 = vmatprep.mubr.bf16.mxu0 0
        %793 = vmatmul.mubr.bf16.gmra.mxu0 %v755
        %v794 = vpop.f32.mrf.mxu0
        %v795 = vadd.f32 0.0, %v794
        %v796 = vpop.f32.mrf.mxu0
        %v797 = vpop.f32.mrf.mxu0
        %v798 = vpop.f32.mrf.mxu0
        %799 = vdwg.mxu0
        %800 = vrot.lane.b32.xlu0 %v403, 64
        %v801 = vpop.permute.xlu0 %800
        %v803 = vsel %vm413, %v654, 0
        %v806 = vsel %vm660, %v801, 0
        %808 = vmatprep.subr.bf16.mxu0 0
        %809 = vmatpush1.bf16.msra.mxu0 0
        %810 = vmatprep.subr.bf16.mxu0 0
        %811 = vmatpush1.bf16.msra.mxu0 0
        %812 = vmatprep.subr.bf16.mxu0 0
        %813 = vmatpush1.bf16.msra.mxu0 0
        %814 = vmatprep.subr.bf16.mxu0 0
        %815 = vmatpush1.bf16.msra.mxu0 0
        %816 = vmatprep.subr.bf16.mxu0 0
        %817 = vmatpush1.bf16.msra.mxu0 0
        %818 = vmatprep.subr.bf16.mxu0 0
        %819 = vmatpush1.bf16.msra.mxu0 0
        %820 = vmatprep.subr.bf16.mxu0 0
        %821 = vmatpush1.bf16.msra.mxu0 0
        %822 = vmatprep.subr.bf16.mxu0 0
        %823 = vmatpush1.bf16.msra.mxu0 %v806
        %824 = vmatprep.subr.bf16.mxu0 0
        %825 = vmatpush2.bf16.msra.mxu0 0
        %826 = vmatprep.subr.bf16.mxu0 0
        %827 = vmatpush2.bf16.msra.mxu0 0
        %828 = vmatprep.subr.bf16.mxu0 0
        %829 = vmatpush2.bf16.msra.mxu0 0
        %830 = vmatprep.subr.bf16.mxu0 0
        %831 = vmatpush2.bf16.msra.mxu0 0
        %832 = vmatprep.subr.bf16.mxu0 0
        %833 = vmatpush2.bf16.msra.mxu0 0
        %834 = vmatprep.subr.bf16.mxu0 0
        %835 = vmatpush2.bf16.msra.mxu0 0
        %836 = vmatprep.subr.bf16.mxu0 0
        %837 = vmatpush2.bf16.msra.mxu0 0
        %838 = vmatprep.subr.bf16.mxu0 0
        %839 = vmatpush2.bf16.msra.mxu0 0
        %840 = vmatprep.mubr.bf16.mxu0 0
        %841 = vmatmul.mubr.bf16.gmra.mxu0 %v803
        %v842 = vpop.f32.mrf.mxu0
        %v843 = vadd.f32 0.0, %v842
        %v844 = vpop.f32.mrf.mxu0
        %v845 = vpop.f32.mrf.mxu0
        %v846 = vpop.f32.mrf.mxu0
        %847 = vdwg.mxu0
        %849 = vrot.lane.b32.xlu0 %v747, 8
        %v850 = vpop.permute.xlu0 %849
        %853 = vrot.lane.b32.xlu0 %v795, 16
        %v854 = vpop.permute.xlu0 %853
        %857 = vrot.lane.b32.xlu0 %v843, 24
        %v858 = vpop.permute.xlu0 %857
        %v860 = vsel %vm413, %v699, %v850
        %vm861 = vcmask 130048
        %v862 = vsel %vm861, %v860, %v854
        %vm863 = vcmask 195584
        %v864 = vsel %vm863, %v862, %v858
        %v865 = vpack.c.bf16 %v864, %v864
        %v866 = vld [vmem:[%s3] sm:$0xf]
        %v867 = vld [vmem:[%s3 + $0x4] sm:$0xf]
        %v868 = vld [vmem:[%s3 + $0x8] sm:$0xf]
        %v869 = vld [vmem:[%s3 + $0xc] sm:$0xf]
        %v870 = vlaneseq
        %v871 = vshrl.u32 %v870, 7
        %v872 = vsub.s32 0, %v871
        %v873 = vrot.slane %v325, %v872
        %v878 = vunpack.c.l.b16 %v866
        %v879 = vunpack.c.l.b16 %v867
        %v880 = vunpack.c.l.b16 %v868
        %v881 = vunpack.c.l.b16 %v869
        %v882 = vpack.c.b16 %v879, %v878
        %v883 = vpack.c.b16 %v881, %v880
        %v887 = vsel %vm346, %v865, 0
        %889 = vmatprep.subr.bf16.mxu0 0
        %890 = vmatpush1.bf16.msra.mxu0 0
        %891 = vmatprep.subr.bf16.mxu0 0
        %892 = vmatpush1.bf16.msra.mxu0 0
        %893 = vmatprep.subr.bf16.mxu0 0
        %894 = vmatpush1.bf16.msra.mxu0 0
        %895 = vmatprep.subr.bf16.mxu0 0
        %896 = vmatpush1.bf16.msra.mxu0 0
        %897 = vmatprep.subr.bf16.mxu0 0
        %898 = vmatpush1.bf16.msra.mxu0 0
        %899 = vmatprep.subr.bf16.mxu0 0
        %900 = vmatpush1.bf16.msra.mxu0 0
        %901 = vmatprep.subr.bf16.mxu0 0
        %902 = vmatpush1.bf16.msra.mxu0 %v883
        %903 = vmatprep.subr.bf16.mxu0 0
        %904 = vmatpush1.bf16.msra.mxu0 %v882
        %905 = vmatprep.subr.bf16.mxu0 0
        %906 = vmatpush2.bf16.msra.mxu0 0
        %907 = vmatprep.subr.bf16.mxu0 0
        %908 = vmatpush2.bf16.msra.mxu0 0
        %909 = vmatprep.subr.bf16.mxu0 0
        %910 = vmatpush2.bf16.msra.mxu0 0
        %911 = vmatprep.subr.bf16.mxu0 0
        %912 = vmatpush2.bf16.msra.mxu0 0
        %913 = vmatprep.subr.bf16.mxu0 0
        %914 = vmatpush2.bf16.msra.mxu0 0
        %915 = vmatprep.subr.bf16.mxu0 0
        %916 = vmatpush2.bf16.msra.mxu0 0
        %917 = vmatprep.subr.bf16.mxu0 0
        %918 = vmatpush2.bf16.msra.mxu0 0
        %919 = vmatprep.subr.bf16.mxu0 0
        %920 = vmatpush2.bf16.msra.mxu0 0
        %921 = vmatprep.mubr.bf16.mxu0 0
        %922 = vmatmul.mubr.bf16.gmra.mxu0 %v887
        %v923 = vpop.f32.mrf.mxu0
        %v924 = vadd.f32 %v873, %v923
        %v925 = vpop.f32.mrf.mxu0
        %v926 = vpop.f32.mrf.mxu0
        %v927 = vpop.f32.mrf.mxu0
        %928 = vdwg.mxu0
        %v929 = vadd.f32 %v324, %v924
        %v930 = vsel %vm346, %v929, 0.0
        %931 = vadd.xlane.f32.xlu0 %v930
        %v932 = vpop.xlane.xlu0 %931
        %v933 = vrcp.pop 32.0
        %v934 = vmul.f32 %v932, %v933
        %v935 = vsub.f32 %v929, %v934
        %v936 = vmul.f32 %v935, %v935
        %v937 = vsel %vm346, %v936, 0.0
        %938 = vadd.xlane.f32.xlu0 %v937
        %v939 = vpop.xlane.xlu0 %938
        %v940 = vmul.f32 %v939, %v933
        %v941 = vadd.f32 %v940, 1e-12
        %v942 = vrsqrt.pop %v941
        %v943 = vmul.f32 %v935, %v942
        %v944 = vlaneseq
        %v945 = vshrl.u32 %v944, 7
        %v946 = vsub.s32 1, %v945
        %v947 = vrot.slane %v325, %v946
        %v948 = vmul.f32 %v943, %v947
        %v949 = vlaneseq
        %v950 = vshrl.u32 %v949, 7
        %v951 = vsub.s32 2, %v950
        %v952 = vrot.slane %v325, %v951
        %v953 = vadd.f32 %v948, %v952
        %v954 = vpack.c.bf16 %v953, %v953
        %v955 = vld [vmem:[#allocation5] sm:$0xf]
        %v956 = vld [vmem:[#allocation5 + $0x4] sm:$0xf]
        %v957 = vld [vmem:[#allocation5 + $0x8] sm:$0xf]
        %v958 = vld [vmem:[#allocation5 + $0xc] sm:$0xf]
        %v959 = vlaneseq
        %v960 = vshrl.u32 %v959, 7
        %v961 = vsub.s32 3, %v960
        %v962 = vrot.slane %v325, %v961
        %v967 = vunpack.c.l.b16 %v955
        %v968 = vunpack.c.l.b16 %v956
        %v969 = vunpack.c.l.b16 %v957
        %v970 = vunpack.c.l.b16 %v958
        %v971 = vpack.c.b16 %v968, %v967
        %v972 = vpack.c.b16 %v970, %v969
        %v976 = vsel %vm346, %v954, 0
        %978 = vmatprep.subr.bf16.mxu0 0
        %979 = vmatpush1.bf16.msra.mxu0 0
        %980 = vmatprep.subr.bf16.mxu0 0
        %981 = vmatpush1.bf16.msra.mxu0 0
        %982 = vmatprep.subr.bf16.mxu0 0
        %983 = vmatpush1.bf16.msra.mxu0 0
        %984 = vmatprep.subr.bf16.mxu0 0
        %985 = vmatpush1.bf16.msra.mxu0 0
        %986 = vmatprep.subr.bf16.mxu0 0
        %987 = vmatpush1.bf16.msra.mxu0 0
        %988 = vmatprep.subr.bf16.mxu0 0
        %989 = vmatpush1.bf16.msra.mxu0 0
        %990 = vmatprep.subr.bf16.mxu0 0
        %991 = vmatpush1.bf16.msra.mxu0 %v972
        %992 = vmatprep.subr.bf16.mxu0 0
        %993 = vmatpush1.bf16.msra.mxu0 %v971
        %994 = vmatprep.subr.bf16.mxu0 0
        %995 = vmatpush2.bf16.msra.mxu0 0
        %996 = vmatprep.subr.bf16.mxu0 0
        %997 = vmatpush2.bf16.msra.mxu0 0
        %998 = vmatprep.subr.bf16.mxu0 0
        %999 = vmatpush2.bf16.msra.mxu0 0
        %1000 = vmatprep.subr.bf16.mxu0 0
        %1001 = vmatpush2.bf16.msra.mxu0 0
        %1002 = vmatprep.subr.bf16.mxu0 0
        %1003 = vmatpush2.bf16.msra.mxu0 0
        %1004 = vmatprep.subr.bf16.mxu0 0
        %1005 = vmatpush2.bf16.msra.mxu0 0
        %1006 = vmatprep.subr.bf16.mxu0 0
        %1007 = vmatpush2.bf16.msra.mxu0 0
        %1008 = vmatprep.subr.bf16.mxu0 0
        %1009 = vmatpush2.bf16.msra.mxu0 0
        %1010 = vmatprep.mubr.bf16.mxu0 0
        %1011 = vmatmul.mubr.bf16.gmra.mxu0 %v976
        %v1012 = vpop.f32.mrf.mxu0
        %v1013 = vadd.f32 %v962, %v1012
        %v1014 = vpop.f32.mrf.mxu0
        %v1015 = vpop.f32.mrf.mxu0
        %v1016 = vpop.f32.mrf.mxu0
        %1017 = vdwg.mxu0
        %v1018 = vmul.f32 %v1013, 0.5
        %v1019 = vmul.f32 %v1013, 0.044715
        %v1020 = vmul.f32 %v1019, %v1013
        %v1021 = vmul.f32 %v1020, %v1013
        %v1022 = vadd.f32 %v1013, %v1021
        %v1023 = vmul.f32 %v1022, 0.7978846
        %v1024 = vtanh.pop %v1023
        %v1025 = vadd.f32 %v1024, 1.0
        %v1026 = vmul.f32 %v1018, %v1025
        %v1027 = vpack.c.bf16 %v1026, %v1026
        %v1028 = vld [vmem:[%s5] sm:$0xf]
        %v1029 = vld [vmem:[%s5 + $0x4] sm:$0xf]
        %v1030 = vld [vmem:[%s5 + $0x8] sm:$0xf]
        %v1031 = vld [vmem:[%s5 + $0xc] sm:$0xf]
        %v1032 = vld [vmem:[%s5 + $0x10] sm:$0xf]
        %v1033 = vld [vmem:[%s5 + $0x14] sm:$0xf]
        %v1034 = vld [vmem:[%s5 + $0x18] sm:$0xf]
        %v1035 = vld [vmem:[%s5 + $0x1c] sm:$0xf]
        %v1036 = vlaneseq
        %v1037 = vshrl.u32 %v1036, 7
        %v1038 = vsub.s32 4, %v1037
        %v1039 = vrot.slane %v325, %v1038
        %v1048 = vunpack.c.l.b16 %v1028
        %v1049 = vunpack.c.l.b16 %v1029
        %v1050 = vunpack.c.l.b16 %v1030
        %v1051 = vunpack.c.l.b16 %v1031
        %v1052 = vunpack.c.l.b16 %v1032
        %v1053 = vunpack.c.l.b16 %v1033
        %v1054 = vunpack.c.l.b16 %v1034
        %v1055 = vunpack.c.l.b16 %v1035
        %v1056 = vpack.c.b16 %v1049, %v1048
        %v1057 = vpack.c.b16 %v1051, %v1050
        %v1058 = vpack.c.b16 %v1053, %v1052
        %v1059 = vpack.c.b16 %v1055, %v1054
        %vm1064 = vcmask 523264
        %v1066 = vsel %vm1064, %v1027, 0
        %1068 = vmatprep.subr.bf16.mxu0 0
        %1069 = vmatpush1.bf16.msra.mxu0 0
        %1070 = vmatprep.subr.bf16.mxu0 0
        %1071 = vmatpush1.bf16.msra.mxu0 0
        %1072 = vmatprep.subr.bf16.mxu0 0
        %1073 = vmatpush1.bf16.msra.mxu0 0
        %1074 = vmatprep.subr.bf16.mxu0 0
        %1075 = vmatpush1.bf16.msra.mxu0 0
        %1076 = vmatprep.subr.bf16.mxu0 0
        %1077 = vmatpush1.bf16.msra.mxu0 %v1059
        %1078 = vmatprep.subr.bf16.mxu0 0
        %1079 = vmatpush1.bf16.msra.mxu0 %v1058
        %1080 = vmatprep.subr.bf16.mxu0 0
        %1081 = vmatpush1.bf16.msra.mxu0 %v1057
        %1082 = vmatprep.subr.bf16.mxu0 0
        %1083 = vmatpush1.bf16.msra.mxu0 %v1056
        %1084 = vmatprep.subr.bf16.mxu0 0
        %1085 = vmatpush2.bf16.msra.mxu0 0
        %1086 = vmatprep.subr.bf16.mxu0 0
        %1087 = vmatpush2.bf16.msra.mxu0 0
        %1088 = vmatprep.subr.bf16.mxu0 0
        %1089 = vmatpush2.bf16.msra.mxu0 0
        %1090 = vmatprep.subr.bf16.mxu0 0
        %1091 = vmatpush2.bf16.msra.mxu0 0
        %1092 = vmatprep.subr.bf16.mxu0 0
        %1093 = vmatpush2.bf16.msra.mxu0 0
        %1094 = vmatprep.subr.bf16.mxu0 0
        %1095 = vmatpush2.bf16.msra.mxu0 0
        %1096 = vmatprep.subr.bf16.mxu0 0
        %1097 = vmatpush2.bf16.msra.mxu0 0
        %1098 = vmatprep.subr.bf16.mxu0 0
        %1099 = vmatpush2.bf16.msra.mxu0 0
        %1100 = vmatprep.mubr.bf16.mxu0 0
        %1101 = vmatmul.mubr.bf16.gmra.mxu0 %v1066
        %v1102 = vpop.f32.mrf.mxu0
        %v1103 = vadd.f32 %v1039, %v1102
        %v1104 = vpop.f32.mrf.mxu0
        %v1105 = vpop.f32.mrf.mxu0
        %v1106 = vpop.f32.mrf.mxu0
        %1107 = vdwg.mxu0
        %v1108 = vadd.f32 %v953, %v1103
        %v1109 = vsel %vm346, %v1108, 0.0
        %1110 = vadd.xlane.f32.xlu0 %v1109
        %v1111 = vpop.xlane.xlu0 %1110
        %v1112 = vmul.f32 %v1111, %v933
        %v1113 = vsub.f32 %v1108, %v1112
        %v1114 = vmul.f32 %v1113, %v1113
        %v1115 = vsel %vm346, %v1114, 0.0
        %1116 = vadd.xlane.f32.xlu0 %v1115
        %v1117 = vpop.xlane.xlu0 %1116
        %v1118 = vmul.f32 %v1117, %v933
        %v1119 = vadd.f32 %v1118, 1e-12
        %v1120 = vrsqrt.pop %v1119
        %v1121 = vmul.f32 %v1113, %v1120
        %v1122 = vlaneseq
        %v1123 = vshrl.u32 %v1122, 7
        %v1124 = vsub.s32 5, %v1123
        %v1125 = vrot.slane %v325, %v1124
        %v1126 = vmul.f32 %v1121, %v1125
        %v1127 = vlaneseq
        %v1128 = vshrl.u32 %v1127, 7
        %v1129 = vsub.s32 6, %v1128
        %v1130 = vrot.slane %v325, %v1129
        %v1131 = vadd.f32 %v1126, %v1130
        %1132 = vst.msk [vmem:[%s318] sm:$0xff] %vm346, %v1131
        %s1133 = sand.u32 %s190, 1
        %s1134 = scalar_lea.sflag [#allocation4], %s1133
        %s1135 = sand.u32 %s190, 1
        %s1136 = smul.addr %s1135, 8
        %s1137 = scalar_lea.vmem [#allocation7], %s1136
        // Predicated region
        $region57: #{tpu_custom_call.1} parent=47 // pred_check
          %p1138 = pneg %p200
        $region58: #{tpu_custom_call.1} parent=47 // pred_check_branch
          %1140 = sbr.rel (%p1138) target = $region60
        $region59: #{tpu_custom_call.1} parent=47 // pred_region
          %s1142 = ssub.s32 128, 128
          %1143 = vsyncadd %s1134, %s1142
          %s1144 = smul.addr %s25, 128
          %s1145 = scalar_lea.hbm %s7, %s1144
          %s1147 = sshll.u32 %s1137, 4
          %s1148 = int_to_ptr.vmem [resolvable:$true] %s1147
          %1150 = dma.vmem_to_hbm [thread:$0]  %s1148, 128, %s1145, %s1134
        $region60: #{tpu_custom_call.1} parent=47 // pred_fallthru
          _
      $region48: #{tpu_custom_call.1} parent=5 // pred_fallthru
        _
      %p1151 = scmp.le.s32.totalorder 2, %s20
      // Predicated region
      $region61: #{tpu_custom_call.1} parent=5 // pred_check
        %p1152 = pneg %p1151
      $region62: #{tpu_custom_call.1} parent=5 // pred_check_branch
        %1154 = sbr.rel (%p1152) target = $region64
      $region63: #{tpu_custom_call.1} parent=5 // pred_region
        %s1155 = ssub.s32 %s20, 2
        // Predicated region
        $region65: #{tpu_custom_call.1} parent=63 // pred_check
          %p1156 = pneg %p206
        $region66: #{tpu_custom_call.1} parent=63 // pred_check_branch
          %1158 = sbr.rel (%p1156) target = $region68
        $region67: #{tpu_custom_call.1} parent=63 // pred_region
          %s1159 = sand.u32 %s191, 1
          %s1160 = scalar_lea.sflag [#allocation4], %s1159
          %s1161 = sand.u32 %s191, 1
          %s1162 = smul.addr %s1161, 8
          %s1163 = scalar_lea.vmem [#allocation7], %s1162
          %1164 = dma.done %s1160, 128
        $region68: #{tpu_custom_call.1} parent=63 // pred_fallthru
          _
      $region64: #{tpu_custom_call.1} parent=5 // pred_fallthru
        _
    $region6: #{tpu_custom_call.1} parent=1 // loop_footer
      %s24 = sadd.s32 1, %s20
    $region7: #{tpu_custom_call.1} parent=1 // loop_footer_branch
      %19 = sbr.rel target = $region3
    $region8: #{tpu_custom_call.1} parent=1 // loop_exit
      _
    %1165 = vsyncpa [#allocation3], 1
    %s1166 = scalar_lea.sflag [#allocation3], 1
    %1167 = vsyncpa %s1166, 1
    %1168 = vsyncpa [#allocation6], 1
    %1169 = vsyncpa [#allocation4], 1
    %s1170 = scalar_lea.sflag [#allocation4], 1
    %1171 = vsyncpa %s1170, 1

</llo_original>
